<compile_context>
chip_gen: v5e
topology: v5e:2x2
jax: 0.10.0
libtpu: 0.0.40
codegen_flags: <defaults>
</compile_context>

<pallas_src>
import functools

import jax
import jax.numpy as jnp
from jax.experimental import pallas as pl
from jax.experimental.pallas import tpu as pltpu


def _round_up(n, m):
    return ((n + m - 1) // m) * m


def _choose_block(batch, block_b, num_cores):
    """Batch tile: as large as possible (<= block_b rows), multiple of 8, and a
    grid that is a multiple of num_cores when there is enough work (v7x=2)."""
    n_tiles = pl.cdiv(batch, block_b)
    if batch >= num_cores * 8:
        n_tiles = _round_up(n_tiles, num_cores)
    return _round_up(pl.cdiv(batch, n_tiles), 8)


def mlp_kernel(x_ref, w1_ref, b1_ref, w2_ref, b2_ref, w3_ref, b3_ref, o_ref):
    # In-kernel f32 -> bf16 cast of the activations (hidden under MXU/DMA).
    x = x_ref[...].astype(jnp.bfloat16)

    # Layer 1: Linear(D_in, 256) + ReLU   (bf16 operands, f32 MXU accumulation)
    h1 = jnp.dot(x, w1_ref[...], preferred_element_type=jnp.float32)
    h1 = jnp.maximum(h1 + b1_ref[...], 0.0).astype(jnp.bfloat16)

    # Layer 2: Linear(256, 128) + ReLU
    h2 = jnp.dot(h1, w2_ref[...], preferred_element_type=jnp.float32)
    h2 = jnp.maximum(h2 + b2_ref[...], 0.0).astype(jnp.bfloat16)

    # Layer 3: Linear(128, C_pad)   (raw logits, lane-dense padded columns)
    out = jnp.dot(h2, w3_ref[...], preferred_element_type=jnp.float32)
    o_ref[...] = (out + b3_ref[...]).astype(o_ref.dtype)   # bf16 writeback


def prepare_params(params):
    """One-time prep (NOT in the hot path): pad the class dim to a lane-dense
    multiple of 128 with zeros and cast matmul weights to bf16."""
    w1, b1, w2, b2, w3, b3 = params
    c = w3.shape[1]
    c_pad = _round_up(max(c, 128), 128)
    w3p = jnp.pad(w3, ((0, 0), (0, c_pad - c)))
    b3p = jnp.pad(b3, ((0, 0), (0, c_pad - c)))
    bf16 = jnp.bfloat16
    return (w1.astype(bf16), b1, w2.astype(bf16), b2, w3p.astype(bf16), b3p)


@functools.partial(jax.jit, static_argnames=("num_classes", "block_b", "num_cores"))
def simple_mlp_forward(x, prepared, num_classes, *, block_b=2048, num_cores=1):
    """Fused 3-layer MLP forward. x: [B, D_in] f32 -> [B, num_classes] f32.

    `prepared` comes from prepare_params(). Set num_cores=2 on v7x so both
    TensorCores get a tile (grid kept a multiple of 2); leave 1 on v5e/v6e.
    """
    w1, b1, w2, b2, w3p, b3p = prepared
    B, D_in = x.shape
    H1, H2 = w1.shape[1], w2.shape[1]
    C_pad = w3p.shape[1]

    block = _choose_block(B, block_b, num_cores)
    grid = (pl.cdiv(B, block),)   # ragged last block: OOB input rows are garbage
                                  # (rows independent), OOB output rows dropped.

    flops = 2 * B * (D_in * H1 + H1 * H2 + H2 * C_pad)
    bytes_accessed = (
        B * D_in * 4                                   # x (f32 in)
        + (w1.size + w2.size + w3p.size) * 2           # bf16 weights
        + (b1.size + b2.size + b3p.size) * 4           # f32 biases
        + B * C_pad * 2                                 # bf16 logits out
    )

    vmem = pl.BlockSpec(memory_space=pltpu.MemorySpace.VMEM)  # resident weights

    out = pl.pallas_call(
        mlp_kernel,
        out_shape=jax.ShapeDtypeStruct((B, C_pad), jnp.bfloat16),
        grid_spec=pltpu.PrefetchScalarGridSpec(
            num_scalar_prefetch=0,
            grid=grid,
            in_specs=[
                pl.BlockSpec((block, D_in), lambda i: (i, 0)),  # x tiled on batch
                vmem,  # w1 [D_in, 256] bf16
                vmem,  # b1 [1, 256]    f32
                vmem,  # w2 [256, 128]  bf16
                vmem,  # b2 [1, 128]    f32
                vmem,  # w3 [128, C_pad] bf16 (zero-padded cols)
                vmem,  # b3 [1, C_pad]   f32  (zero-padded cols)
            ],
            out_specs=pl.BlockSpec((block, C_pad), lambda i: (i, 0)),
        ),
        compiler_params=pltpu.CompilerParams(
            dimension_semantics=("parallel",),
        ),
        cost_estimate=pl.CostEstimate(
            flops=flops, transcendentals=0, bytes_accessed=bytes_accessed),
    )(x, w1, b1, w2, b2, w3p, b3p)

    # slice off class padding and restore f32 logits (pure layout plumbing)
    return out[:B, :num_classes].astype(jnp.float32)


def init_params(key, input_dim, num_classes):
    """Deterministic init mimicking torch.nn.Linear default U(-1/sqrt(fan_in), ..)."""
    dims = [(input_dim, 256), (256, 128), (128, num_classes)]
    params = []
    for fan_in, fan_out in dims:
        key, kw, kb = jax.random.split(key, 3)
        bound = 1.0 / jnp.sqrt(fan_in)
        w = jax.random.uniform(kw, (fan_in, fan_out), jnp.float32, -bound, bound)
        b = jax.random.uniform(kb, (1, fan_out), jnp.float32, -bound, bound)
        params += [w, b]
    return tuple(params)


def reference_forward(x, params):
    """Reference with the same bf16-operand / f32-accumulate recipe as the kernel."""
    w1, b1, w2, b2, w3, b3 = params
    bf16 = jnp.bfloat16
    h = jnp.dot(x.astype(bf16), w1.astype(bf16), preferred_element_type=jnp.float32)
    h = jnp.maximum(h + b1, 0.0)
    h = jnp.dot(h.astype(bf16), w2.astype(bf16), preferred_element_type=jnp.float32)
    h = jnp.maximum(h + b2, 0.0)
    out = jnp.dot(h.astype(bf16), w3.astype(bf16), preferred_element_type=jnp.float32)
    return out + b3


if __name__ == "__main__":
    key = jax.random.PRNGKey(0)
    k_x, k_p = jax.random.split(key)

    B, D_IN, NUM_CLASSES = 512, 64, 10
    x = jax.random.normal(k_x, (B, D_IN), jnp.float32)
    params = init_params(k_p, D_IN, NUM_CLASSES)
    prepared = prepare_params(params)          # one-time weight prep
    ref = reference_forward(x, params)

    # default path (grid=1 on v5e/v6e: whole batch in one tile)
    out = jax.block_until_ready(simple_mlp_forward(x, prepared, NUM_CLASSES))
    assert out.shape == (B, NUM_CLASSES), out.shape
    assert jnp.allclose(out, ref, atol=2e-2, rtol=2e-2), "mismatch vs reference"

    # v7x-style 2-way split (grid=2; on 1-TC chips this is just a 2-step loop)
    out2 = jax.block_until_ready(
        simple_mlp_forward(x, prepared, NUM_CLASSES, num_cores=2))
    assert jnp.allclose(out2, ref, atol=2e-2, rtol=2e-2), "num_cores=2 mismatch"

    # small, odd batch: exercises the ragged (overhanging) last block path
    x_small = jax.random.normal(k_x, (7, D_IN), jnp.float32)
    out_small = jax.block_until_ready(
        simple_mlp_forward(x_small, prepared, NUM_CLASSES))
    ref_small = reference_forward(x_small, params)
    assert out_small.shape == (7, NUM_CLASSES)
    assert jnp.allclose(out_small, ref_small, atol=2e-2, rtol=2e-2), "small-batch mismatch"

    print("KERNEL_OK")
</pallas_src>

<mosaic_0001>
module attributes {stable_mosaic.version = 11 : i64} {
  func.func @mlp_kernel(%arg0: i32, %arg1: memref<512x64xf32, #tpu.memory_space<vmem>>, %arg2: memref<64x256xbf16, #tpu.memory_space<vmem>>, %arg3: memref<1x256xf32, #tpu.memory_space<vmem>>, %arg4: memref<256x128xbf16, #tpu.memory_space<vmem>>, %arg5: memref<1x128xf32, #tpu.memory_space<vmem>>, %arg6: memref<128x128xbf16, #tpu.memory_space<vmem>>, %arg7: memref<1x128xf32, #tpu.memory_space<vmem>>, %arg8: memref<512x128xbf16, #tpu.memory_space<vmem>>) attributes {dimension_semantics = [#tpu.dimension_semantics<parallel>], iteration_bounds = array<i64: 1>, scalar_prefetch = 0 : i64, scratch_operands = 0 : i64, tpu.core_type = #tpu.core_type<tc>, window_params = [{transform_indices = @transform_0, window_bounds = array<i64: 512, 64>}, {pipeline_mode = #tpu.pipeline_mode<synchronous>, transform_indices = @transform_1, window_bounds = array<i64: 64, 256>}, {pipeline_mode = #tpu.pipeline_mode<synchronous>, transform_indices = @transform_2, window_bounds = array<i64: 1, 256>}, {pipeline_mode = #tpu.pipeline_mode<synchronous>, transform_indices = @transform_3, window_bounds = array<i64: 256, 128>}, {pipeline_mode = #tpu.pipeline_mode<synchronous>, transform_indices = @transform_4, window_bounds = array<i64: 1, 128>}, {pipeline_mode = #tpu.pipeline_mode<synchronous>, transform_indices = @transform_5, window_bounds = array<i64: 128, 128>}, {pipeline_mode = #tpu.pipeline_mode<synchronous>, transform_indices = @transform_6, window_bounds = array<i64: 1, 128>}, {transform_indices = @transform_7, window_bounds = array<i64: 512, 128>}]} {
    %c0 = arith.constant 0 : index
    %c0_0 = arith.constant 0 : index
    %0 = vector.load %arg1[%c0, %c0_0] : memref<512x64xf32, #tpu.memory_space<vmem>>, vector<512x64xf32>
    %1 = arith.truncf %0 : vector<512x64xf32> to vector<512x64xbf16>
    %c0_1 = arith.constant 0 : index
    %c0_2 = arith.constant 0 : index
    %2 = vector.load %arg2[%c0_1, %c0_2] : memref<64x256xbf16, #tpu.memory_space<vmem>>, vector<64x256xbf16>
    %cst = arith.constant dense<0.000000e+00> : vector<512x256xf32>
    %3 = tpu.matmul %1, %2, %cst {dimension_numbers = #tpu.dot_dimension_numbers<[1], [0], [0], [1], [0, 0, 1, 1], [], []>} : vector<512x64xbf16>, vector<64x256xbf16>, vector<512x256xf32> -> vector<512x256xf32>
    %c0_3 = arith.constant 0 : index
    %c0_4 = arith.constant 0 : index
    %4 = vector.load %arg3[%c0_3, %c0_4] : memref<1x256xf32, #tpu.memory_space<vmem>>, vector<1x256xf32>
    %5 = vector.broadcast %4 : vector<1x256xf32> to vector<512x256xf32>
    %6 = arith.addf %3, %5 : vector<512x256xf32>
    %cst_5 = arith.constant 0.000000e+00 : f32
    %7 = vector.broadcast %cst_5 : f32 to vector<512x256xf32>
    %8 = arith.maximumf %6, %7 : vector<512x256xf32>
    %9 = arith.truncf %8 : vector<512x256xf32> to vector<512x256xbf16>
    %c0_6 = arith.constant 0 : index
    %c0_7 = arith.constant 0 : index
    %10 = vector.load %arg4[%c0_6, %c0_7] : memref<256x128xbf16, #tpu.memory_space<vmem>>, vector<256x128xbf16>
    %cst_8 = arith.constant dense<0.000000e+00> : vector<512x128xf32>
    %11 = tpu.matmul %9, %10, %cst_8 {dimension_numbers = #tpu.dot_dimension_numbers<[1], [0], [0], [1], [0, 0, 1, 1], [], []>} : vector<512x256xbf16>, vector<256x128xbf16>, vector<512x128xf32> -> vector<512x128xf32>
    %c0_9 = arith.constant 0 : index
    %c0_10 = arith.constant 0 : index
    %12 = vector.load %arg5[%c0_9, %c0_10] : memref<1x128xf32, #tpu.memory_space<vmem>>, vector<1x128xf32>
    %13 = vector.broadcast %12 : vector<1x128xf32> to vector<512x128xf32>
    %14 = arith.addf %11, %13 : vector<512x128xf32>
    %cst_11 = arith.constant 0.000000e+00 : f32
    %15 = vector.broadcast %cst_11 : f32 to vector<512x128xf32>
    %16 = arith.maximumf %14, %15 : vector<512x128xf32>
    %17 = arith.truncf %16 : vector<512x128xf32> to vector<512x128xbf16>
    %c0_12 = arith.constant 0 : index
    %c0_13 = arith.constant 0 : index
    %18 = vector.load %arg6[%c0_12, %c0_13] : memref<128x128xbf16, #tpu.memory_space<vmem>>, vector<128x128xbf16>
    %cst_14 = arith.constant dense<0.000000e+00> : vector<512x128xf32>
    %19 = tpu.matmul %17, %18, %cst_14 {dimension_numbers = #tpu.dot_dimension_numbers<[1], [0], [0], [1], [0, 0, 1, 1], [], []>} : vector<512x128xbf16>, vector<128x128xbf16>, vector<512x128xf32> -> vector<512x128xf32>
    %c0_15 = arith.constant 0 : index
    %c0_16 = arith.constant 0 : index
    %20 = vector.load %arg7[%c0_15, %c0_16] : memref<1x128xf32, #tpu.memory_space<vmem>>, vector<1x128xf32>
    %21 = vector.broadcast %20 : vector<1x128xf32> to vector<512x128xf32>
    %22 = arith.addf %19, %21 : vector<512x128xf32>
    %23 = arith.truncf %22 : vector<512x128xf32> to vector<512x128xbf16>
    %c0_17 = arith.constant 0 : index
    %c0_18 = arith.constant 0 : index
    %24 = vector.load %arg8[%c0_17, %c0_18] : memref<512x128xbf16, #tpu.memory_space<vmem>>, vector<512x128xbf16>
    tpu.vector_store %arg8[%c0_17, %c0_18], %23 {strides = array<i32>} : memref<512x128xbf16, #tpu.memory_space<vmem>>, vector<512x128xbf16>,
    return
  }
  func.func @transform_0(%arg0: i32) -> (i32, i32) {
    %c0_i32 = arith.constant 0 : i32
    %c0_i32_0 = arith.constant 0 : i32
    return %arg0, %c0_i32 : i32, i32
  }
  func.func @transform_1(%arg0: i32) -> (i32, i32) {
    %c0_i32 = arith.constant 0 : i32
    %c0_i32_0 = arith.constant 0 : i32
    %c0_i32_1 = arith.constant 0 : i32
    return %c0_i32, %c0_i32_0 : i32, i32
  }
  func.func @transform_2(%arg0: i32) -> (i32, i32) {
    %c0_i32 = arith.constant 0 : i32
    %c0_i32_0 = arith.constant 0 : i32
    %c0_i32_1 = arith.constant 0 : i32
    return %c0_i32, %c0_i32_0 : i32, i32
  }
  func.func @transform_3(%arg0: i32) -> (i32, i32) {
    %c0_i32 = arith.constant 0 : i32
    %c0_i32_0 = arith.constant 0 : i32
    %c0_i32_1 = arith.constant 0 : i32
    return %c0_i32, %c0_i32_0 : i32, i32
  }
  func.func @transform_4(%arg0: i32) -> (i32, i32) {
    %c0_i32 = arith.constant 0 : i32
    %c0_i32_0 = arith.constant 0 : i32
    %c0_i32_1 = arith.constant 0 : i32
    return %c0_i32, %c0_i32_0 : i32, i32
  }
  func.func @transform_5(%arg0: i32) -> (i32, i32) {
    %c0_i32 = arith.constant 0 : i32
    %c0_i32_0 = arith.constant 0 : i32
    %c0_i32_1 = arith.constant 0 : i32
    return %c0_i32, %c0_i32_0 : i32, i32
  }
  func.func @transform_6(%arg0: i32) -> (i32, i32) {
    %c0_i32 = arith.constant 0 : i32
    %c0_i32_0 = arith.constant 0 : i32
    %c0_i32_1 = arith.constant 0 : i32
    return %c0_i32, %c0_i32_0 : i32, i32
  }
  func.func @transform_7(%arg0: i32) -> (i32, i32) {
    %c0_i32 = arith.constant 0 : i32
    %c0_i32_0 = arith.constant 0 : i32
    return %arg0, %c0_i32 : i32, i32
  }
}

</mosaic_0001>

<llo_original>
// kernel: simple_mlp_forward.1
$region0: #{simple_mlp_forward.1}
  #allocation0 [shape = 'u32[]', space=smem, size = 0x4, offset = 0x4, fixed_abs, tag = 'smem constant byte address 0x4 - core index']
  #allocation1 [shape = 'u32[72,128]{1,0:T(1,128)}', space=vmem, size = 0x9000, scoped, tag = 'internal scratch']
  %s0 = inlined_call_operand.vmem [shape: f32[512,64], index: 0, kind: input, shape index: {}]
  %s1 = inlined_call_operand.vmem [shape: bf16[64,256], index: 1, kind: input, shape index: {}]
  %s2 = inlined_call_operand.vmem [shape: f32[1,256], index: 2, kind: input, shape index: {}]
  %s3 = inlined_call_operand.vmem [shape: bf16[256,128], index: 3, kind: input, shape index: {}]
  %s4 = inlined_call_operand.vmem [shape: f32[1,128], index: 4, kind: input, shape index: {}]
  %s5 = inlined_call_operand.vmem [shape: bf16[128,128], index: 5, kind: input, shape index: {}]
  %s6 = inlined_call_operand.vmem [shape: f32[1,128], index: 6, kind: input, shape index: {}]
  %s7 = inlined_call_operand.vmem [shape: bf16[512,128], index: 7, kind: output, shape index: {}]
  %s8 = sld [smem:[#allocation0]]
  $region38: #{simple_mlp_forward.1} parent=0
    _
  %s10 = ssub.s32 1, %s8
  %s11 = scalar_select 0, %s10, %s8
  // Predicated region
  $region2: #{simple_mlp_forward.1} parent=0 // pred_check
    _
  $region3: #{simple_mlp_forward.1} parent=0 // pred_check_branch
    %13 = sbr.rel (0) target = $region5
  $region4: #{simple_mlp_forward.1} parent=0 // pred_region
    _
  $region5: #{simple_mlp_forward.1} parent=0 // pred_fallthru
    _
  // Predicated region
  $region6: #{simple_mlp_forward.1} parent=0 // pred_check
    _
  $region7: #{simple_mlp_forward.1} parent=0 // pred_check_branch
    %15 = sbr.rel (0) target = $region9
  $region8: #{simple_mlp_forward.1} parent=0 // pred_region
    _
  $region9: #{simple_mlp_forward.1} parent=0 // pred_fallthru
    _
  // Predicated region
  $region10: #{simple_mlp_forward.1} parent=0 // pred_check
    _
  $region11: #{simple_mlp_forward.1} parent=0 // pred_check_branch
    %17 = sbr.rel (0) target = $region13
  $region12: #{simple_mlp_forward.1} parent=0 // pred_region
    _
  $region13: #{simple_mlp_forward.1} parent=0 // pred_fallthru
    _
  // Predicated region
  $region14: #{simple_mlp_forward.1} parent=0 // pred_check
    _
  $region15: #{simple_mlp_forward.1} parent=0 // pred_check_branch
    %19 = sbr.rel (0) target = $region17
  $region16: #{simple_mlp_forward.1} parent=0 // pred_region
    _
  $region17: #{simple_mlp_forward.1} parent=0 // pred_fallthru
    _
  // Predicated region
  $region18: #{simple_mlp_forward.1} parent=0 // pred_check
    _
  $region19: #{simple_mlp_forward.1} parent=0 // pred_check_branch
    %21 = sbr.rel (0) target = $region21
  $region20: #{simple_mlp_forward.1} parent=0 // pred_region
    _
  $region21: #{simple_mlp_forward.1} parent=0 // pred_fallthru
    _
  // Predicated region
  $region22: #{simple_mlp_forward.1} parent=0 // pred_check
    _
  $region23: #{simple_mlp_forward.1} parent=0 // pred_check_branch
    %23 = sbr.rel (0) target = $region25
  $region24: #{simple_mlp_forward.1} parent=0 // pred_region
    _
  $region25: #{simple_mlp_forward.1} parent=0 // pred_fallthru
    _
  // Predicated region
  $region26: #{simple_mlp_forward.1} parent=0 // pred_check
    _
  $region27: #{simple_mlp_forward.1} parent=0 // pred_check_branch
    %25 = sbr.rel (0) target = $region29
  $region28: #{simple_mlp_forward.1} parent=0 // pred_region
    _
  $region29: #{simple_mlp_forward.1} parent=0 // pred_fallthru
    _
  %v27 = vld [vmem:[%s0] sm:$0xff]
  %v28 = vld [vmem:[%s0 + $0x8] sm:$0xff]
  %v29 = vld [vmem:[%s0 + $0x10] sm:$0xff]
  %v30 = vld [vmem:[%s0 + $0x18] sm:$0xff]
  %v31 = vld [vmem:[%s0 + $0x20] sm:$0xff]
  %v32 = vld [vmem:[%s0 + $0x28] sm:$0xff]
  %v33 = vld [vmem:[%s0 + $0x30] sm:$0xff]
  %v34 = vld [vmem:[%s0 + $0x38] sm:$0xff]
  %v35 = vld [vmem:[%s0 + $0x40] sm:$0xff]
  %v36 = vld [vmem:[%s0 + $0x48] sm:$0xff]
  %v37 = vld [vmem:[%s0 + $0x50] sm:$0xff]
  %v38 = vld [vmem:[%s0 + $0x58] sm:$0xff]
  %v39 = vld [vmem:[%s0 + $0x60] sm:$0xff]
  %v40 = vld [vmem:[%s0 + $0x68] sm:$0xff]
  %v41 = vld [vmem:[%s0 + $0x70] sm:$0xff]
  %v42 = vld [vmem:[%s0 + $0x78] sm:$0xff]
  %v43 = vld [vmem:[%s0 + $0x80] sm:$0xff]
  %v44 = vld [vmem:[%s0 + $0x88] sm:$0xff]
  %v45 = vld [vmem:[%s0 + $0x90] sm:$0xff]
  %v46 = vld [vmem:[%s0 + $0x98] sm:$0xff]
  %v47 = vld [vmem:[%s0 + $0xa0] sm:$0xff]
  %v48 = vld [vmem:[%s0 + $0xa8] sm:$0xff]
  %v49 = vld [vmem:[%s0 + $0xb0] sm:$0xff]
  %v50 = vld [vmem:[%s0 + $0xb8] sm:$0xff]
  %v51 = vld [vmem:[%s0 + $0xc0] sm:$0xff]
  %v52 = vld [vmem:[%s0 + $0xc8] sm:$0xff]
  %v53 = vld [vmem:[%s0 + $0xd0] sm:$0xff]
  %v54 = vld [vmem:[%s0 + $0xd8] sm:$0xff]
  %v55 = vld [vmem:[%s0 + $0xe0] sm:$0xff]
  %v56 = vld [vmem:[%s0 + $0xe8] sm:$0xff]
  %v57 = vld [vmem:[%s0 + $0xf0] sm:$0xff]
  %v58 = vld [vmem:[%s0 + $0xf8] sm:$0xff]
  %v59 = vld [vmem:[%s0 + $0x100] sm:$0xff]
  %v60 = vld [vmem:[%s0 + $0x108] sm:$0xff]
  %v61 = vld [vmem:[%s0 + $0x110] sm:$0xff]
  %v62 = vld [vmem:[%s0 + $0x118] sm:$0xff]
  %v63 = vld [vmem:[%s0 + $0x120] sm:$0xff]
  %v64 = vld [vmem:[%s0 + $0x128] sm:$0xff]
  %v65 = vld [vmem:[%s0 + $0x130] sm:$0xff]
  %v66 = vld [vmem:[%s0 + $0x138] sm:$0xff]
  %v67 = vld [vmem:[%s0 + $0x140] sm:$0xff]
  %v68 = vld [vmem:[%s0 + $0x148] sm:$0xff]
  %v69 = vld [vmem:[%s0 + $0x150] sm:$0xff]
  %v70 = vld [vmem:[%s0 + $0x158] sm:$0xff]
  %v71 = vld [vmem:[%s0 + $0x160] sm:$0xff]
  %v72 = vld [vmem:[%s0 + $0x168] sm:$0xff]
  %v73 = vld [vmem:[%s0 + $0x170] sm:$0xff]
  %v74 = vld [vmem:[%s0 + $0x178] sm:$0xff]
  %v75 = vld [vmem:[%s0 + $0x180] sm:$0xff]
  %v76 = vld [vmem:[%s0 + $0x188] sm:$0xff]
  %v77 = vld [vmem:[%s0 + $0x190] sm:$0xff]
  %v78 = vld [vmem:[%s0 + $0x198] sm:$0xff]
  %v79 = vld [vmem:[%s0 + $0x1a0] sm:$0xff]
  %v80 = vld [vmem:[%s0 + $0x1a8] sm:$0xff]
  %v81 = vld [vmem:[%s0 + $0x1b0] sm:$0xff]
  %v82 = vld [vmem:[%s0 + $0x1b8] sm:$0xff]
  %v83 = vld [vmem:[%s0 + $0x1c0] sm:$0xff]
  %v84 = vld [vmem:[%s0 + $0x1c8] sm:$0xff]
  %v85 = vld [vmem:[%s0 + $0x1d0] sm:$0xff]
  %v86 = vld [vmem:[%s0 + $0x1d8] sm:$0xff]
  %v87 = vld [vmem:[%s0 + $0x1e0] sm:$0xff]
  %v88 = vld [vmem:[%s0 + $0x1e8] sm:$0xff]
  %v89 = vld [vmem:[%s0 + $0x1f0] sm:$0xff]
  %v90 = vld [vmem:[%s0 + $0x1f8] sm:$0xff]
  %v91 = vpack.c.bf16 %v28, %v27
  %v92 = vpack.c.bf16 %v30, %v29
  %v93 = vpack.c.bf16 %v32, %v31
  %v94 = vpack.c.bf16 %v34, %v33
  %v95 = vpack.c.bf16 %v36, %v35
  %v96 = vpack.c.bf16 %v38, %v37
  %v97 = vpack.c.bf16 %v40, %v39
  %v98 = vpack.c.bf16 %v42, %v41
  %v99 = vpack.c.bf16 %v44, %v43
  %v100 = vpack.c.bf16 %v46, %v45
  %v101 = vpack.c.bf16 %v48, %v47
  %v102 = vpack.c.bf16 %v50, %v49
  %v103 = vpack.c.bf16 %v52, %v51
  %v104 = vpack.c.bf16 %v54, %v53
  %v105 = vpack.c.bf16 %v56, %v55
  %v106 = vpack.c.bf16 %v58, %v57
  %v107 = vpack.c.bf16 %v60, %v59
  %v108 = vpack.c.bf16 %v62, %v61
  %v109 = vpack.c.bf16 %v64, %v63
  %v110 = vpack.c.bf16 %v66, %v65
  %v111 = vpack.c.bf16 %v68, %v67
  %v112 = vpack.c.bf16 %v70, %v69
  %v113 = vpack.c.bf16 %v72, %v71
  %v114 = vpack.c.bf16 %v74, %v73
  %v115 = vpack.c.bf16 %v76, %v75
  %v116 = vpack.c.bf16 %v78, %v77
  %v117 = vpack.c.bf16 %v80, %v79
  %v118 = vpack.c.bf16 %v82, %v81
  %v119 = vpack.c.bf16 %v84, %v83
  %v120 = vpack.c.bf16 %v86, %v85
  %v121 = vpack.c.bf16 %v88, %v87
  %v122 = vpack.c.bf16 %v90, %v89
  %v123 = vld [vmem:[%s1] sm:$0xff]
  %v124 = vld [vmem:[%s1 + $0x8] sm:$0xff]
  %v125 = vld [vmem:[%s1 + $0x10] sm:$0xff]
  %v126 = vld [vmem:[%s1 + $0x18] sm:$0xff]
  %v127 = vld [vmem:[%s1 + $0x20] sm:$0xff]
  %v128 = vld [vmem:[%s1 + $0x28] sm:$0xff]
  %v129 = vld [vmem:[%s1 + $0x30] sm:$0xff]
  %v130 = vld [vmem:[%s1 + $0x38] sm:$0xff]
  %v131 = vld [vmem:[%s2] sm:$0x3]
  %v133 = vperm.slane %v131, 0
  %v134 = vperm.slane %v131, 1
  %v145 = vunpack.c.l.b16 %v123
  %v146 = vunpack.c.h.b16 %v123
  %v147 = vunpack.c.l.b16 %v124
  %v148 = vunpack.c.h.b16 %v124
  %v149 = vunpack.c.l.b16 %v125
  %v150 = vunpack.c.h.b16 %v125
  %v151 = vunpack.c.l.b16 %v126
  %v152 = vunpack.c.h.b16 %v126
  %v153 = vunpack.c.l.b16 %v127
  %v154 = vunpack.c.h.b16 %v127
  %v155 = vunpack.c.l.b16 %v128
  %v156 = vunpack.c.h.b16 %v128
  %v157 = vunpack.c.l.b16 %v129
  %v158 = vunpack.c.h.b16 %v129
  %v159 = vunpack.c.l.b16 %v130
  %v160 = vunpack.c.h.b16 %v130
  %v161 = vpack.c.b16 %v147, %v145
  %v162 = vpack.c.b16 %v148, %v146
  %v163 = vpack.c.b16 %v151, %v149
  %v164 = vpack.c.b16 %v152, %v150
  %v165 = vpack.c.b16 %v155, %v153
  %v166 = vpack.c.b16 %v156, %v154
  %v167 = vpack.c.b16 %v159, %v157
  %v168 = vpack.c.b16 %v160, %v158
  %vm177 = vcmask 523264
  %v179 = vsel %vm177, %v91, 0
  %v182 = vsel %vm177, %v92, 0
  %v185 = vsel %vm177, %v93, 0
  %v188 = vsel %vm177, %v94, 0
  %v191 = vsel %vm177, %v95, 0
  %v194 = vsel %vm177, %v96, 0
  %v197 = vsel %vm177, %v97, 0
  %v200 = vsel %vm177, %v98, 0
  %v203 = vsel %vm177, %v99, 0
  %v206 = vsel %vm177, %v100, 0
  %v209 = vsel %vm177, %v101, 0
  %v212 = vsel %vm177, %v102, 0
  %v215 = vsel %vm177, %v103, 0
  %v218 = vsel %vm177, %v104, 0
  %v221 = vsel %vm177, %v105, 0
  %v224 = vsel %vm177, %v106, 0
  %v227 = vsel %vm177, %v107, 0
  %v230 = vsel %vm177, %v108, 0
  %v233 = vsel %vm177, %v109, 0
  %v236 = vsel %vm177, %v110, 0
  %v239 = vsel %vm177, %v111, 0
  %v242 = vsel %vm177, %v112, 0
  %v245 = vsel %vm177, %v113, 0
  %v248 = vsel %vm177, %v114, 0
  %v251 = vsel %vm177, %v115, 0
  %v254 = vsel %vm177, %v116, 0
  %v257 = vsel %vm177, %v117, 0
  %v260 = vsel %vm177, %v118, 0
  %v263 = vsel %vm177, %v119, 0
  %v266 = vsel %vm177, %v120, 0
  %v269 = vsel %vm177, %v121, 0
  %v272 = vsel %vm177, %v122, 0
  %274 = vmatpush.bf16.msra.mxu0 0
  %275 = vmatpush.bf16.msra.mxu0 0
  %276 = vmatpush.bf16.msra.mxu0 0
  %277 = vmatpush.bf16.msra.mxu0 0
  %278 = vmatpush.bf16.msra.mxu0 %v167
  %279 = vmatpush.bf16.msra.mxu0 %v165
  %280 = vmatpush.bf16.msra.mxu0 %v163
  %281 = vmatpush.bf16.msra.mxu0 %v161
  %282 = vmatmul.bf16.gmra.mxu0 %v179
  %v283 = vpop.f32.mrf.mxu0
  %v284 = vadd.f32 %v133, %v283
  %v285 = vpop.f32.mrf.mxu0
  %v286 = vadd.f32 %v133, %v285
  %287 = vmatmul.bf16.gmra.mxu0 %v182
  %v288 = vpop.f32.mrf.mxu0
  %v289 = vadd.f32 %v133, %v288
  %v290 = vpop.f32.mrf.mxu0
  %v291 = vadd.f32 %v133, %v290
  %292 = vmatmul.bf16.gmra.mxu0 %v185
  %v293 = vpop.f32.mrf.mxu0
  %v294 = vadd.f32 %v133, %v293
  %v295 = vpop.f32.mrf.mxu0
  %v296 = vadd.f32 %v133, %v295
  %297 = vmatmul.bf16.gmra.mxu0 %v188
  %v298 = vpop.f32.mrf.mxu0
  %v299 = vadd.f32 %v133, %v298
  %v300 = vpop.f32.mrf.mxu0
  %v301 = vadd.f32 %v133, %v300
  %302 = vmatmul.bf16.gmra.mxu0 %v191
  %v303 = vpop.f32.mrf.mxu0
  %v304 = vadd.f32 %v133, %v303
  %v305 = vpop.f32.mrf.mxu0
  %v306 = vadd.f32 %v133, %v305
  %307 = vmatmul.bf16.gmra.mxu0 %v194
  %v308 = vpop.f32.mrf.mxu0
  %v309 = vadd.f32 %v133, %v308
  %v310 = vpop.f32.mrf.mxu0
  %v311 = vadd.f32 %v133, %v310
  %312 = vmatmul.bf16.gmra.mxu0 %v197
  %v313 = vpop.f32.mrf.mxu0
  %v314 = vadd.f32 %v133, %v313
  %v315 = vpop.f32.mrf.mxu0
  %v316 = vadd.f32 %v133, %v315
  %317 = vmatmul.bf16.gmra.mxu0 %v200
  %v318 = vpop.f32.mrf.mxu0
  %v319 = vadd.f32 %v133, %v318
  %v320 = vpop.f32.mrf.mxu0
  %v321 = vadd.f32 %v133, %v320
  %322 = vmatmul.bf16.gmra.mxu0 %v203
  %v323 = vpop.f32.mrf.mxu0
  %v324 = vadd.f32 %v133, %v323
  %v325 = vpop.f32.mrf.mxu0
  %v326 = vadd.f32 %v133, %v325
  %327 = vmatmul.bf16.gmra.mxu0 %v206
  %v328 = vpop.f32.mrf.mxu0
  %v329 = vadd.f32 %v133, %v328
  %v330 = vpop.f32.mrf.mxu0
  %v331 = vadd.f32 %v133, %v330
  %332 = vmatmul.bf16.gmra.mxu0 %v209
  %v333 = vpop.f32.mrf.mxu0
  %v334 = vadd.f32 %v133, %v333
  %v335 = vpop.f32.mrf.mxu0
  %v336 = vadd.f32 %v133, %v335
  %337 = vmatmul.bf16.gmra.mxu0 %v212
  %v338 = vpop.f32.mrf.mxu0
  %v339 = vadd.f32 %v133, %v338
  %v340 = vpop.f32.mrf.mxu0
  %v341 = vadd.f32 %v133, %v340
  %342 = vmatmul.bf16.gmra.mxu0 %v215
  %v343 = vpop.f32.mrf.mxu0
  %v344 = vadd.f32 %v133, %v343
  %v345 = vpop.f32.mrf.mxu0
  %v346 = vadd.f32 %v133, %v345
  %347 = vmatmul.bf16.gmra.mxu0 %v218
  %v348 = vpop.f32.mrf.mxu0
  %v349 = vadd.f32 %v133, %v348
  %v350 = vpop.f32.mrf.mxu0
  %v351 = vadd.f32 %v133, %v350
  %352 = vmatmul.bf16.gmra.mxu0 %v221
  %v353 = vpop.f32.mrf.mxu0
  %v354 = vadd.f32 %v133, %v353
  %v355 = vpop.f32.mrf.mxu0
  %v356 = vadd.f32 %v133, %v355
  %357 = vmatmul.bf16.gmra.mxu0 %v224
  %v358 = vpop.f32.mrf.mxu0
  %v359 = vadd.f32 %v133, %v358
  %v360 = vpop.f32.mrf.mxu0
  %v361 = vadd.f32 %v133, %v360
  %362 = vmatmul.bf16.gmra.mxu0 %v227
  %v363 = vpop.f32.mrf.mxu0
  %v364 = vadd.f32 %v133, %v363
  %v365 = vpop.f32.mrf.mxu0
  %v366 = vadd.f32 %v133, %v365
  %367 = vmatmul.bf16.gmra.mxu0 %v230
  %v368 = vpop.f32.mrf.mxu0
  %v369 = vadd.f32 %v133, %v368
  %v370 = vpop.f32.mrf.mxu0
  %v371 = vadd.f32 %v133, %v370
  %372 = vmatmul.bf16.gmra.mxu0 %v233
  %v373 = vpop.f32.mrf.mxu0
  %v374 = vadd.f32 %v133, %v373
  %v375 = vpop.f32.mrf.mxu0
  %v376 = vadd.f32 %v133, %v375
  %377 = vmatmul.bf16.gmra.mxu0 %v236
  %v378 = vpop.f32.mrf.mxu0
  %v379 = vadd.f32 %v133, %v378
  %v380 = vpop.f32.mrf.mxu0
  %v381 = vadd.f32 %v133, %v380
  %382 = vmatmul.bf16.gmra.mxu0 %v239
  %v383 = vpop.f32.mrf.mxu0
  %v384 = vadd.f32 %v133, %v383
  %v385 = vpop.f32.mrf.mxu0
  %v386 = vadd.f32 %v133, %v385
  %387 = vmatmul.bf16.gmra.mxu0 %v242
  %v388 = vpop.f32.mrf.mxu0
  %v389 = vadd.f32 %v133, %v388
  %v390 = vpop.f32.mrf.mxu0
  %v391 = vadd.f32 %v133, %v390
  %392 = vmatmul.bf16.gmra.mxu0 %v245
  %v393 = vpop.f32.mrf.mxu0
  %v394 = vadd.f32 %v133, %v393
  %v395 = vpop.f32.mrf.mxu0
  %v396 = vadd.f32 %v133, %v395
  %397 = vmatmul.bf16.gmra.mxu0 %v248
  %v398 = vpop.f32.mrf.mxu0
  %v399 = vadd.f32 %v133, %v398
  %v400 = vpop.f32.mrf.mxu0
  %v401 = vadd.f32 %v133, %v400
  %402 = vmatmul.bf16.gmra.mxu0 %v251
  %v403 = vpop.f32.mrf.mxu0
  %v404 = vadd.f32 %v133, %v403
  %v405 = vpop.f32.mrf.mxu0
  %v406 = vadd.f32 %v133, %v405
  %407 = vmatmul.bf16.gmra.mxu0 %v254
  %v408 = vpop.f32.mrf.mxu0
  %v409 = vadd.f32 %v133, %v408
  %v410 = vpop.f32.mrf.mxu0
  %v411 = vadd.f32 %v133, %v410
  %412 = vmatmul.bf16.gmra.mxu0 %v257
  %v413 = vpop.f32.mrf.mxu0
  %v414 = vadd.f32 %v133, %v413
  %v415 = vpop.f32.mrf.mxu0
  %v416 = vadd.f32 %v133, %v415
  %417 = vmatmul.bf16.gmra.mxu0 %v260
  %v418 = vpop.f32.mrf.mxu0
  %v419 = vadd.f32 %v133, %v418
  %v420 = vpop.f32.mrf.mxu0
  %v421 = vadd.f32 %v133, %v420
  %422 = vmatmul.bf16.gmra.mxu0 %v263
  %v423 = vpop.f32.mrf.mxu0
  %v424 = vadd.f32 %v133, %v423
  %v425 = vpop.f32.mrf.mxu0
  %v426 = vadd.f32 %v133, %v425
  %427 = vmatmul.bf16.gmra.mxu0 %v266
  %v428 = vpop.f32.mrf.mxu0
  %v429 = vadd.f32 %v133, %v428
  %v430 = vpop.f32.mrf.mxu0
  %v431 = vadd.f32 %v133, %v430
  %432 = vmatmul.bf16.gmra.mxu0 %v269
  %v433 = vpop.f32.mrf.mxu0
  %v434 = vadd.f32 %v133, %v433
  %v435 = vpop.f32.mrf.mxu0
  %v436 = vadd.f32 %v133, %v435
  %437 = vmatmul.bf16.gmra.mxu0 %v272
  %v438 = vpop.f32.mrf.mxu0
  %v439 = vadd.f32 %v133, %v438
  %v440 = vpop.f32.mrf.mxu0
  %v441 = vadd.f32 %v133, %v440
  %442 = vdwg.mxu0
  %443 = vmatpush.bf16.msra.mxu0 0
  %444 = vmatpush.bf16.msra.mxu0 0
  %445 = vmatpush.bf16.msra.mxu0 0
  %446 = vmatpush.bf16.msra.mxu0 0
  %447 = vmatpush.bf16.msra.mxu0 %v168
  %448 = vmatpush.bf16.msra.mxu0 %v166
  %449 = vmatpush.bf16.msra.mxu0 %v164
  %450 = vmatpush.bf16.msra.mxu0 %v162
  %451 = vmatmul.bf16.gmra.mxu0 %v179
  %v452 = vpop.f32.mrf.mxu0
  %v453 = vadd.f32 %v134, %v452
  %v454 = vpop.f32.mrf.mxu0
  %v455 = vadd.f32 %v134, %v454
  %456 = vmatmul.bf16.gmra.mxu0 %v182
  %v457 = vpop.f32.mrf.mxu0
  %v458 = vadd.f32 %v134, %v457
  %v459 = vpop.f32.mrf.mxu0
  %v460 = vadd.f32 %v134, %v459
  %461 = vmatmul.bf16.gmra.mxu0 %v185
  %v462 = vpop.f32.mrf.mxu0
  %v463 = vadd.f32 %v134, %v462
  %v464 = vpop.f32.mrf.mxu0
  %v465 = vadd.f32 %v134, %v464
  %466 = vmatmul.bf16.gmra.mxu0 %v188
  %v467 = vpop.f32.mrf.mxu0
  %v468 = vadd.f32 %v134, %v467
  %v469 = vpop.f32.mrf.mxu0
  %v470 = vadd.f32 %v134, %v469
  %471 = vmatmul.bf16.gmra.mxu0 %v191
  %v472 = vpop.f32.mrf.mxu0
  %v473 = vadd.f32 %v134, %v472
  %v474 = vpop.f32.mrf.mxu0
  %v475 = vadd.f32 %v134, %v474
  %476 = vmatmul.bf16.gmra.mxu0 %v194
  %v477 = vpop.f32.mrf.mxu0
  %v478 = vadd.f32 %v134, %v477
  %v479 = vpop.f32.mrf.mxu0
  %v480 = vadd.f32 %v134, %v479
  %481 = vmatmul.bf16.gmra.mxu0 %v197
  %v482 = vpop.f32.mrf.mxu0
  %v483 = vadd.f32 %v134, %v482
  %v484 = vpop.f32.mrf.mxu0
  %v485 = vadd.f32 %v134, %v484
  %486 = vmatmul.bf16.gmra.mxu0 %v200
  %v487 = vpop.f32.mrf.mxu0
  %v488 = vadd.f32 %v134, %v487
  %v489 = vpop.f32.mrf.mxu0
  %v490 = vadd.f32 %v134, %v489
  %491 = vmatmul.bf16.gmra.mxu0 %v203
  %v492 = vpop.f32.mrf.mxu0
  %v493 = vadd.f32 %v134, %v492
  %v494 = vpop.f32.mrf.mxu0
  %v495 = vadd.f32 %v134, %v494
  %496 = vmatmul.bf16.gmra.mxu0 %v206
  %v497 = vpop.f32.mrf.mxu0
  %v498 = vadd.f32 %v134, %v497
  %v499 = vpop.f32.mrf.mxu0
  %v500 = vadd.f32 %v134, %v499
  %501 = vmatmul.bf16.gmra.mxu0 %v209
  %v502 = vpop.f32.mrf.mxu0
  %v503 = vadd.f32 %v134, %v502
  %v504 = vpop.f32.mrf.mxu0
  %v505 = vadd.f32 %v134, %v504
  %506 = vmatmul.bf16.gmra.mxu0 %v212
  %v507 = vpop.f32.mrf.mxu0
  %v508 = vadd.f32 %v134, %v507
  %v509 = vpop.f32.mrf.mxu0
  %v510 = vadd.f32 %v134, %v509
  %511 = vmatmul.bf16.gmra.mxu0 %v215
  %v512 = vpop.f32.mrf.mxu0
  %v513 = vadd.f32 %v134, %v512
  %v514 = vpop.f32.mrf.mxu0
  %v515 = vadd.f32 %v134, %v514
  %516 = vmatmul.bf16.gmra.mxu0 %v218
  %v517 = vpop.f32.mrf.mxu0
  %v518 = vadd.f32 %v134, %v517
  %v519 = vpop.f32.mrf.mxu0
  %v520 = vadd.f32 %v134, %v519
  %521 = vmatmul.bf16.gmra.mxu0 %v221
  %v522 = vpop.f32.mrf.mxu0
  %v523 = vadd.f32 %v134, %v522
  %v524 = vpop.f32.mrf.mxu0
  %v525 = vadd.f32 %v134, %v524
  %526 = vmatmul.bf16.gmra.mxu0 %v224
  %v527 = vpop.f32.mrf.mxu0
  %v528 = vadd.f32 %v134, %v527
  %v529 = vpop.f32.mrf.mxu0
  %v530 = vadd.f32 %v134, %v529
  %531 = vmatmul.bf16.gmra.mxu0 %v227
  %v532 = vpop.f32.mrf.mxu0
  %v533 = vadd.f32 %v134, %v532
  %v534 = vpop.f32.mrf.mxu0
  %v535 = vadd.f32 %v134, %v534
  %536 = vmatmul.bf16.gmra.mxu0 %v230
  %v537 = vpop.f32.mrf.mxu0
  %v538 = vadd.f32 %v134, %v537
  %v539 = vpop.f32.mrf.mxu0
  %v540 = vadd.f32 %v134, %v539
  %541 = vmatmul.bf16.gmra.mxu0 %v233
  %v542 = vpop.f32.mrf.mxu0
  %v543 = vadd.f32 %v134, %v542
  %v544 = vpop.f32.mrf.mxu0
  %v545 = vadd.f32 %v134, %v544
  %546 = vmatmul.bf16.gmra.mxu0 %v236
  %v547 = vpop.f32.mrf.mxu0
  %v548 = vadd.f32 %v134, %v547
  %v549 = vpop.f32.mrf.mxu0
  %v550 = vadd.f32 %v134, %v549
  %551 = vmatmul.bf16.gmra.mxu0 %v239
  %v552 = vpop.f32.mrf.mxu0
  %v553 = vadd.f32 %v134, %v552
  %v554 = vpop.f32.mrf.mxu0
  %v555 = vadd.f32 %v134, %v554
  %556 = vmatmul.bf16.gmra.mxu0 %v242
  %v557 = vpop.f32.mrf.mxu0
  %v558 = vadd.f32 %v134, %v557
  %v559 = vpop.f32.mrf.mxu0
  %v560 = vadd.f32 %v134, %v559
  %561 = vmatmul.bf16.gmra.mxu0 %v245
  %v562 = vpop.f32.mrf.mxu0
  %v563 = vadd.f32 %v134, %v562
  %v564 = vpop.f32.mrf.mxu0
  %v565 = vadd.f32 %v134, %v564
  %566 = vmatmul.bf16.gmra.mxu0 %v248
  %v567 = vpop.f32.mrf.mxu0
  %v568 = vadd.f32 %v134, %v567
  %v569 = vpop.f32.mrf.mxu0
  %v570 = vadd.f32 %v134, %v569
  %571 = vmatmul.bf16.gmra.mxu0 %v251
  %v572 = vpop.f32.mrf.mxu0
  %v573 = vadd.f32 %v134, %v572
  %v574 = vpop.f32.mrf.mxu0
  %v575 = vadd.f32 %v134, %v574
  %576 = vmatmul.bf16.gmra.mxu0 %v254
  %v577 = vpop.f32.mrf.mxu0
  %v578 = vadd.f32 %v134, %v577
  %v579 = vpop.f32.mrf.mxu0
  %v580 = vadd.f32 %v134, %v579
  %581 = vmatmul.bf16.gmra.mxu0 %v257
  %v582 = vpop.f32.mrf.mxu0
  %v583 = vadd.f32 %v134, %v582
  %v584 = vpop.f32.mrf.mxu0
  %v585 = vadd.f32 %v134, %v584
  %586 = vmatmul.bf16.gmra.mxu0 %v260
  %v587 = vpop.f32.mrf.mxu0
  %v588 = vadd.f32 %v134, %v587
  %v589 = vpop.f32.mrf.mxu0
  %v590 = vadd.f32 %v134, %v589
  %591 = vmatmul.bf16.gmra.mxu0 %v263
  %v592 = vpop.f32.mrf.mxu0
  %v593 = vadd.f32 %v134, %v592
  %v594 = vpop.f32.mrf.mxu0
  %v595 = vadd.f32 %v134, %v594
  %596 = vmatmul.bf16.gmra.mxu0 %v266
  %v597 = vpop.f32.mrf.mxu0
  %v598 = vadd.f32 %v134, %v597
  %v599 = vpop.f32.mrf.mxu0
  %v600 = vadd.f32 %v134, %v599
  %601 = vmatmul.bf16.gmra.mxu0 %v269
  %v602 = vpop.f32.mrf.mxu0
  %v603 = vadd.f32 %v134, %v602
  %v604 = vpop.f32.mrf.mxu0
  %v605 = vadd.f32 %v134, %v604
  %606 = vmatmul.bf16.gmra.mxu0 %v272
  %v607 = vpop.f32.mrf.mxu0
  %v608 = vadd.f32 %v134, %v607
  %v609 = vpop.f32.mrf.mxu0
  %v610 = vadd.f32 %v134, %v609
  %611 = vdwg.mxu0
  %v612 = vmax.f32 %v284, 0.0
  %v613 = vmax.f32 %v453, 0.0
  %v614 = vmax.f32 %v286, 0.0
  %v615 = vmax.f32 %v455, 0.0
  %v616 = vmax.f32 %v289, 0.0
  %v617 = vmax.f32 %v458, 0.0
  %v618 = vmax.f32 %v291, 0.0
  %v619 = vmax.f32 %v460, 0.0
  %v620 = vmax.f32 %v294, 0.0
  %v621 = vmax.f32 %v463, 0.0
  %v622 = vmax.f32 %v296, 0.0
  %v623 = vmax.f32 %v465, 0.0
  %v624 = vmax.f32 %v299, 0.0
  %v625 = vmax.f32 %v468, 0.0
  %v626 = vmax.f32 %v301, 0.0
  %v627 = vmax.f32 %v470, 0.0
  %v628 = vmax.f32 %v304, 0.0
  %v629 = vmax.f32 %v473, 0.0
  %v630 = vmax.f32 %v306, 0.0
  %v631 = vmax.f32 %v475, 0.0
  %v632 = vmax.f32 %v309, 0.0
  %v633 = vmax.f32 %v478, 0.0
  %v634 = vmax.f32 %v311, 0.0
  %v635 = vmax.f32 %v480, 0.0
  %v636 = vmax.f32 %v314, 0.0
  %v637 = vmax.f32 %v483, 0.0
  %v638 = vmax.f32 %v316, 0.0
  %v639 = vmax.f32 %v485, 0.0
  %v640 = vmax.f32 %v319, 0.0
  %v641 = vmax.f32 %v488, 0.0
  %v642 = vmax.f32 %v321, 0.0
  %v643 = vmax.f32 %v490, 0.0
  %v644 = vmax.f32 %v324, 0.0
  %v645 = vmax.f32 %v493, 0.0
  %v646 = vmax.f32 %v326, 0.0
  %v647 = vmax.f32 %v495, 0.0
  %v648 = vmax.f32 %v329, 0.0
  %v649 = vmax.f32 %v498, 0.0
  %v650 = vmax.f32 %v331, 0.0
  %v651 = vmax.f32 %v500, 0.0
  %v652 = vmax.f32 %v334, 0.0
  %v653 = vmax.f32 %v503, 0.0
  %v654 = vmax.f32 %v336, 0.0
  %v655 = vmax.f32 %v505, 0.0
  %v656 = vmax.f32 %v339, 0.0
  %v657 = vmax.f32 %v508, 0.0
  %v658 = vmax.f32 %v341, 0.0
  %v659 = vmax.f32 %v510, 0.0
  %v660 = vmax.f32 %v344, 0.0
  %v661 = vmax.f32 %v513, 0.0
  %v662 = vmax.f32 %v346, 0.0
  %v663 = vmax.f32 %v515, 0.0
  %v664 = vmax.f32 %v349, 0.0
  %v665 = vmax.f32 %v518, 0.0
  %v666 = vmax.f32 %v351, 0.0
  %v667 = vmax.f32 %v520, 0.0
  %v668 = vmax.f32 %v354, 0.0
  %v669 = vmax.f32 %v523, 0.0
  %v670 = vmax.f32 %v356, 0.0
  %v671 = vmax.f32 %v525, 0.0
  %v672 = vmax.f32 %v359, 0.0
  %v673 = vmax.f32 %v528, 0.0
  %v674 = vmax.f32 %v361, 0.0
  %v675 = vmax.f32 %v530, 0.0
  %v676 = vmax.f32 %v364, 0.0
  %v677 = vmax.f32 %v533, 0.0
  %v678 = vmax.f32 %v366, 0.0
  %v679 = vmax.f32 %v535, 0.0
  %v680 = vmax.f32 %v369, 0.0
  %v681 = vmax.f32 %v538, 0.0
  %v682 = vmax.f32 %v371, 0.0
  %v683 = vmax.f32 %v540, 0.0
  %v684 = vmax.f32 %v374, 0.0
  %v685 = vmax.f32 %v543, 0.0
  %v686 = vmax.f32 %v376, 0.0
  %v687 = vmax.f32 %v545, 0.0
  %v688 = vmax.f32 %v379, 0.0
  %v689 = vmax.f32 %v548, 0.0
  %v690 = vmax.f32 %v381, 0.0
  %v691 = vmax.f32 %v550, 0.0
  %v692 = vmax.f32 %v384, 0.0
  %v693 = vmax.f32 %v553, 0.0
  %v694 = vmax.f32 %v386, 0.0
  %v695 = vmax.f32 %v555, 0.0
  %v696 = vmax.f32 %v389, 0.0
  %v697 = vmax.f32 %v558, 0.0
  %v698 = vmax.f32 %v391, 0.0
  %v699 = vmax.f32 %v560, 0.0
  %v700 = vmax.f32 %v394, 0.0
  %v701 = vmax.f32 %v563, 0.0
  %v702 = vmax.f32 %v396, 0.0
  %v703 = vmax.f32 %v565, 0.0
  %v704 = vmax.f32 %v399, 0.0
  %v705 = vmax.f32 %v568, 0.0
  %v706 = vmax.f32 %v401, 0.0
  %v707 = vmax.f32 %v570, 0.0
  %v708 = vmax.f32 %v404, 0.0
  %v709 = vmax.f32 %v573, 0.0
  %v710 = vmax.f32 %v406, 0.0
  %v711 = vmax.f32 %v575, 0.0
  %v712 = vmax.f32 %v409, 0.0
  %v713 = vmax.f32 %v578, 0.0
  %v714 = vmax.f32 %v411, 0.0
  %v715 = vmax.f32 %v580, 0.0
  %v716 = vmax.f32 %v414, 0.0
  %v717 = vmax.f32 %v583, 0.0
  %v718 = vmax.f32 %v416, 0.0
  %v719 = vmax.f32 %v585, 0.0
  %v720 = vmax.f32 %v419, 0.0
  %v721 = vmax.f32 %v588, 0.0
  %v722 = vmax.f32 %v421, 0.0
  %v723 = vmax.f32 %v590, 0.0
  %v724 = vmax.f32 %v424, 0.0
  %v725 = vmax.f32 %v593, 0.0
  %v726 = vmax.f32 %v426, 0.0
  %v727 = vmax.f32 %v595, 0.0
  %v728 = vmax.f32 %v429, 0.0
  %v729 = vmax.f32 %v598, 0.0
  %v730 = vmax.f32 %v431, 0.0
  %v731 = vmax.f32 %v600, 0.0
  %v732 = vmax.f32 %v434, 0.0
  %v733 = vmax.f32 %v603, 0.0
  %v734 = vmax.f32 %v436, 0.0
  %v735 = vmax.f32 %v605, 0.0
  %v736 = vmax.f32 %v439, 0.0
  %v737 = vmax.f32 %v608, 0.0
  %v738 = vmax.f32 %v441, 0.0
  %v739 = vmax.f32 %v610, 0.0
  %v740 = vpack.c.bf16 %v614, %v612
  %v741 = vpack.c.bf16 %v615, %v613
  %v742 = vpack.c.bf16 %v618, %v616
  %v743 = vpack.c.bf16 %v619, %v617
  %v744 = vpack.c.bf16 %v622, %v620
  %v745 = vpack.c.bf16 %v623, %v621
  %v746 = vpack.c.bf16 %v626, %v624
  %v747 = vpack.c.bf16 %v627, %v625
  %v748 = vpack.c.bf16 %v630, %v628
  %v749 = vpack.c.bf16 %v631, %v629
  %v750 = vpack.c.bf16 %v634, %v632
  %v751 = vpack.c.bf16 %v635, %v633
  %v752 = vpack.c.bf16 %v638, %v636
  %v753 = vpack.c.bf16 %v639, %v637
  %v754 = vpack.c.bf16 %v642, %v640
  %v755 = vpack.c.bf16 %v643, %v641
  %v756 = vpack.c.bf16 %v646, %v644
  %v757 = vpack.c.bf16 %v647, %v645
  %v758 = vpack.c.bf16 %v650, %v648
  %v759 = vpack.c.bf16 %v651, %v649
  %v760 = vpack.c.bf16 %v654, %v652
  %v761 = vpack.c.bf16 %v655, %v653
  %v762 = vpack.c.bf16 %v658, %v656
  %v763 = vpack.c.bf16 %v659, %v657
  %v764 = vpack.c.bf16 %v662, %v660
  %v765 = vpack.c.bf16 %v663, %v661
  %v766 = vpack.c.bf16 %v666, %v664
  %v767 = vpack.c.bf16 %v667, %v665
  %v768 = vpack.c.bf16 %v670, %v668
  %v769 = vpack.c.bf16 %v671, %v669
  %v770 = vpack.c.bf16 %v674, %v672
  %v771 = vpack.c.bf16 %v675, %v673
  %v772 = vpack.c.bf16 %v678, %v676
  %v773 = vpack.c.bf16 %v679, %v677
  %v774 = vpack.c.bf16 %v682, %v680
  %v775 = vpack.c.bf16 %v683, %v681
  %v776 = vpack.c.bf16 %v686, %v684
  %v777 = vpack.c.bf16 %v687, %v685
  %v778 = vpack.c.bf16 %v690, %v688
  %v779 = vpack.c.bf16 %v691, %v689
  %v780 = vpack.c.bf16 %v694, %v692
  %v781 = vpack.c.bf16 %v695, %v693
  %v782 = vpack.c.bf16 %v698, %v696
  %v783 = vpack.c.bf16 %v699, %v697
  %v784 = vpack.c.bf16 %v702, %v700
  %v785 = vpack.c.bf16 %v703, %v701
  %v786 = vpack.c.bf16 %v706, %v704
  %v787 = vpack.c.bf16 %v707, %v705
  %v788 = vpack.c.bf16 %v710, %v708
  %v789 = vpack.c.bf16 %v711, %v709
  %v790 = vpack.c.bf16 %v714, %v712
  %v791 = vpack.c.bf16 %v715, %v713
  %v792 = vpack.c.bf16 %v718, %v716
  %v793 = vpack.c.bf16 %v719, %v717
  %v794 = vpack.c.bf16 %v722, %v720
  %v795 = vpack.c.bf16 %v723, %v721
  %v796 = vpack.c.bf16 %v726, %v724
  %v797 = vpack.c.bf16 %v727, %v725
  %v798 = vpack.c.bf16 %v730, %v728
  %v799 = vpack.c.bf16 %v731, %v729
  %v800 = vpack.c.bf16 %v734, %v732
  %v801 = vpack.c.bf16 %v735, %v733
  %v802 = vpack.c.bf16 %v738, %v736
  %v803 = vpack.c.bf16 %v739, %v737
  %v804 = vld [vmem:[%s3] sm:$0xf]
  %v805 = vld [vmem:[%s3 + $0x4] sm:$0xf]
  %v806 = vld [vmem:[%s3 + $0x8] sm:$0xf]
  %v807 = vld [vmem:[%s3 + $0xc] sm:$0xf]
  %v808 = vld [vmem:[%s3 + $0x10] sm:$0xf]
  %v809 = vld [vmem:[%s3 + $0x14] sm:$0xf]
  %v810 = vld [vmem:[%s3 + $0x18] sm:$0xf]
  %v811 = vld [vmem:[%s3 + $0x1c] sm:$0xf]
  %v812 = vld [vmem:[%s3 + $0x20] sm:$0xf]
  %v813 = vld [vmem:[%s3 + $0x24] sm:$0xf]
  %v814 = vld [vmem:[%s3 + $0x28] sm:$0xf]
  %v815 = vld [vmem:[%s3 + $0x2c] sm:$0xf]
  %v816 = vld [vmem:[%s3 + $0x30] sm:$0xf]
  %v817 = vld [vmem:[%s3 + $0x34] sm:$0xf]
  %v818 = vld [vmem:[%s3 + $0x38] sm:$0xf]
  %v819 = vld [vmem:[%s3 + $0x3c] sm:$0xf]
  %v820 = vld [vmem:[%s3 + $0x40] sm:$0xf]
  %v821 = vld [vmem:[%s3 + $0x44] sm:$0xf]
  %v822 = vld [vmem:[%s3 + $0x48] sm:$0xf]
  %v823 = vld [vmem:[%s3 + $0x4c] sm:$0xf]
  %v824 = vld [vmem:[%s3 + $0x50] sm:$0xf]
  %v825 = vld [vmem:[%s3 + $0x54] sm:$0xf]
  %v826 = vld [vmem:[%s3 + $0x58] sm:$0xf]
  %v827 = vld [vmem:[%s3 + $0x5c] sm:$0xf]
  %v828 = vld [vmem:[%s3 + $0x60] sm:$0xf]
  %v829 = vld [vmem:[%s3 + $0x64] sm:$0xf]
  %v830 = vld [vmem:[%s3 + $0x68] sm:$0xf]
  %v831 = vld [vmem:[%s3 + $0x6c] sm:$0xf]
  %v832 = vld [vmem:[%s3 + $0x70] sm:$0xf]
  %v833 = vld [vmem:[%s3 + $0x74] sm:$0xf]
  %v834 = vld [vmem:[%s3 + $0x78] sm:$0xf]
  %v835 = vld [vmem:[%s3 + $0x7c] sm:$0xf]
  %v836 = vld [vmem:[%s4] sm:$0x1]
  %v838 = vperm.slane %v836, 0
  %v872 = vunpack.c.l.b16 %v804
  %v873 = vunpack.c.l.b16 %v805
  %v874 = vunpack.c.l.b16 %v806
  %v875 = vunpack.c.l.b16 %v807
  %v876 = vunpack.c.l.b16 %v808
  %v877 = vunpack.c.l.b16 %v809
  %v878 = vunpack.c.l.b16 %v810
  %v879 = vunpack.c.l.b16 %v811
  %v880 = vunpack.c.l.b16 %v812
  %v881 = vunpack.c.l.b16 %v813
  %v882 = vunpack.c.l.b16 %v814
  %v883 = vunpack.c.l.b16 %v815
  %v884 = vunpack.c.l.b16 %v816
  %v885 = vunpack.c.l.b16 %v817
  %v886 = vunpack.c.l.b16 %v818
  %v887 = vunpack.c.l.b16 %v819
  %v888 = vunpack.c.l.b16 %v820
  %v889 = vunpack.c.l.b16 %v821
  %v890 = vunpack.c.l.b16 %v822
  %v891 = vunpack.c.l.b16 %v823
  %v892 = vunpack.c.l.b16 %v824
  %v893 = vunpack.c.l.b16 %v825
  %v894 = vunpack.c.l.b16 %v826
  %v895 = vunpack.c.l.b16 %v827
  %v896 = vunpack.c.l.b16 %v828
  %v897 = vunpack.c.l.b16 %v829
  %v898 = vunpack.c.l.b16 %v830
  %v899 = vunpack.c.l.b16 %v831
  %v900 = vunpack.c.l.b16 %v832
  %v901 = vunpack.c.l.b16 %v833
  %v902 = vunpack.c.l.b16 %v834
  %v903 = vunpack.c.l.b16 %v835
  %v904 = vpack.c.b16 %v873, %v872
  %v905 = vpack.c.b16 %v875, %v874
  %v906 = vpack.c.b16 %v877, %v876
  %v907 = vpack.c.b16 %v879, %v878
  %v908 = vpack.c.b16 %v881, %v880
  %v909 = vpack.c.b16 %v883, %v882
  %v910 = vpack.c.b16 %v885, %v884
  %v911 = vpack.c.b16 %v887, %v886
  %v912 = vpack.c.b16 %v889, %v888
  %v913 = vpack.c.b16 %v891, %v890
  %v914 = vpack.c.b16 %v893, %v892
  %v915 = vpack.c.b16 %v895, %v894
  %v916 = vpack.c.b16 %v897, %v896
  %v917 = vpack.c.b16 %v899, %v898
  %v918 = vpack.c.b16 %v901, %v900
  %v919 = vpack.c.b16 %v903, %v902
  %936 = vmatpush.bf16.msra.mxu0 %v911
  %937 = vmatpush.bf16.msra.mxu0 %v910
  %938 = vmatpush.bf16.msra.mxu0 %v909
  %939 = vmatpush.bf16.msra.mxu0 %v908
  %940 = vmatpush.bf16.msra.mxu0 %v907
  %941 = vmatpush.bf16.msra.mxu0 %v906
  %942 = vmatpush.bf16.msra.mxu0 %v905
  %943 = vmatpush.bf16.msra.mxu0 %v904
  %944 = vmatmul.bf16.gmra.mxu0 %v740
  %v945 = vpop.f32.mrf.mxu0
  %v946 = vadd.f32 %v838, %v945
  %v947 = vpop.f32.mrf.mxu0
  %v948 = vadd.f32 %v838, %v947
  %949 = vmatmul.bf16.gmra.mxu0 %v742
  %v950 = vpop.f32.mrf.mxu0
  %v951 = vadd.f32 %v838, %v950
  %v952 = vpop.f32.mrf.mxu0
  %v953 = vadd.f32 %v838, %v952
  %954 = vmatmul.bf16.gmra.mxu0 %v744
  %v955 = vpop.f32.mrf.mxu0
  %v956 = vadd.f32 %v838, %v955
  %v957 = vpop.f32.mrf.mxu0
  %v958 = vadd.f32 %v838, %v957
  %959 = vmatmul.bf16.gmra.mxu0 %v746
  %v960 = vpop.f32.mrf.mxu0
  %v961 = vadd.f32 %v838, %v960
  %v962 = vpop.f32.mrf.mxu0
  %v963 = vadd.f32 %v838, %v962
  %964 = vmatmul.bf16.gmra.mxu0 %v748
  %v965 = vpop.f32.mrf.mxu0
  %v966 = vadd.f32 %v838, %v965
  %v967 = vpop.f32.mrf.mxu0
  %v968 = vadd.f32 %v838, %v967
  %969 = vmatmul.bf16.gmra.mxu0 %v750
  %v970 = vpop.f32.mrf.mxu0
  %v971 = vadd.f32 %v838, %v970
  %v972 = vpop.f32.mrf.mxu0
  %v973 = vadd.f32 %v838, %v972
  %974 = vmatmul.bf16.gmra.mxu0 %v752
  %v975 = vpop.f32.mrf.mxu0
  %v976 = vadd.f32 %v838, %v975
  %v977 = vpop.f32.mrf.mxu0
  %v978 = vadd.f32 %v838, %v977
  %979 = vmatmul.bf16.gmra.mxu0 %v754
  %v980 = vpop.f32.mrf.mxu0
  %v981 = vadd.f32 %v838, %v980
  %v982 = vpop.f32.mrf.mxu0
  %v983 = vadd.f32 %v838, %v982
  %984 = vmatmul.bf16.gmra.mxu0 %v756
  %v985 = vpop.f32.mrf.mxu0
  %v986 = vadd.f32 %v838, %v985
  %v987 = vpop.f32.mrf.mxu0
  %v988 = vadd.f32 %v838, %v987
  %989 = vmatmul.bf16.gmra.mxu0 %v758
  %v990 = vpop.f32.mrf.mxu0
  %v991 = vadd.f32 %v838, %v990
  %v992 = vpop.f32.mrf.mxu0
  %v993 = vadd.f32 %v838, %v992
  %994 = vmatmul.bf16.gmra.mxu0 %v760
  %v995 = vpop.f32.mrf.mxu0
  %v996 = vadd.f32 %v838, %v995
  %v997 = vpop.f32.mrf.mxu0
  %v998 = vadd.f32 %v838, %v997
  %999 = vmatmul.bf16.gmra.mxu0 %v762
  %v1000 = vpop.f32.mrf.mxu0
  %v1001 = vadd.f32 %v838, %v1000
  %v1002 = vpop.f32.mrf.mxu0
  %v1003 = vadd.f32 %v838, %v1002
  %1004 = vmatmul.bf16.gmra.mxu0 %v764
  %v1005 = vpop.f32.mrf.mxu0
  %v1006 = vadd.f32 %v838, %v1005
  %v1007 = vpop.f32.mrf.mxu0
  %v1008 = vadd.f32 %v838, %v1007
  %1009 = vmatmul.bf16.gmra.mxu0 %v766
  %v1010 = vpop.f32.mrf.mxu0
  %v1011 = vadd.f32 %v838, %v1010
  %v1012 = vpop.f32.mrf.mxu0
  %v1013 = vadd.f32 %v838, %v1012
  %1014 = vmatmul.bf16.gmra.mxu0 %v768
  %v1015 = vpop.f32.mrf.mxu0
  %v1016 = vadd.f32 %v838, %v1015
  %v1017 = vpop.f32.mrf.mxu0
  %v1018 = vadd.f32 %v838, %v1017
  %1019 = vmatmul.bf16.gmra.mxu0 %v770
  %v1020 = vpop.f32.mrf.mxu0
  %v1021 = vadd.f32 %v838, %v1020
  %v1022 = vpop.f32.mrf.mxu0
  %v1023 = vadd.f32 %v838, %v1022
  %1024 = vmatmul.bf16.gmra.mxu0 %v772
  %v1025 = vpop.f32.mrf.mxu0
  %v1026 = vadd.f32 %v838, %v1025
  %v1027 = vpop.f32.mrf.mxu0
  %v1028 = vadd.f32 %v838, %v1027
  %1029 = vmatmul.bf16.gmra.mxu0 %v774
  %v1030 = vpop.f32.mrf.mxu0
  %v1031 = vadd.f32 %v838, %v1030
  %v1032 = vpop.f32.mrf.mxu0
  %v1033 = vadd.f32 %v838, %v1032
  %1034 = vmatmul.bf16.gmra.mxu0 %v776
  %v1035 = vpop.f32.mrf.mxu0
  %v1036 = vadd.f32 %v838, %v1035
  %v1037 = vpop.f32.mrf.mxu0
  %v1038 = vadd.f32 %v838, %v1037
  %1039 = vmatmul.bf16.gmra.mxu0 %v778
  %v1040 = vpop.f32.mrf.mxu0
  %v1041 = vadd.f32 %v838, %v1040
  %v1042 = vpop.f32.mrf.mxu0
  %v1043 = vadd.f32 %v838, %v1042
  %1044 = vmatmul.bf16.gmra.mxu0 %v780
  %v1045 = vpop.f32.mrf.mxu0
  %v1046 = vadd.f32 %v838, %v1045
  %v1047 = vpop.f32.mrf.mxu0
  %v1048 = vadd.f32 %v838, %v1047
  %1049 = vmatmul.bf16.gmra.mxu0 %v782
  %v1050 = vpop.f32.mrf.mxu0
  %v1051 = vadd.f32 %v838, %v1050
  %v1052 = vpop.f32.mrf.mxu0
  %v1053 = vadd.f32 %v838, %v1052
  %1054 = vmatmul.bf16.gmra.mxu0 %v784
  %v1055 = vpop.f32.mrf.mxu0
  %v1056 = vadd.f32 %v838, %v1055
  %v1057 = vpop.f32.mrf.mxu0
  %v1058 = vadd.f32 %v838, %v1057
  %1059 = vmatmul.bf16.gmra.mxu0 %v786
  %v1060 = vpop.f32.mrf.mxu0
  %v1061 = vadd.f32 %v838, %v1060
  %v1062 = vpop.f32.mrf.mxu0
  %v1063 = vadd.f32 %v838, %v1062
  %1064 = vmatmul.bf16.gmra.mxu0 %v788
  %v1065 = vpop.f32.mrf.mxu0
  %v1066 = vadd.f32 %v838, %v1065
  %v1067 = vpop.f32.mrf.mxu0
  %v1068 = vadd.f32 %v838, %v1067
  %1069 = vmatmul.bf16.gmra.mxu0 %v790
  %v1070 = vpop.f32.mrf.mxu0
  %v1071 = vadd.f32 %v838, %v1070
  %v1072 = vpop.f32.mrf.mxu0
  %v1073 = vadd.f32 %v838, %v1072
  %1074 = vmatmul.bf16.gmra.mxu0 %v792
  %v1075 = vpop.f32.mrf.mxu0
  %v1076 = vadd.f32 %v838, %v1075
  %v1077 = vpop.f32.mrf.mxu0
  %v1078 = vadd.f32 %v838, %v1077
  %1079 = vmatmul.bf16.gmra.mxu0 %v794
  %v1080 = vpop.f32.mrf.mxu0
  %v1081 = vadd.f32 %v838, %v1080
  %v1082 = vpop.f32.mrf.mxu0
  %v1083 = vadd.f32 %v838, %v1082
  %1084 = vmatmul.bf16.gmra.mxu0 %v796
  %v1085 = vpop.f32.mrf.mxu0
  %v1086 = vadd.f32 %v838, %v1085
  %v1087 = vpop.f32.mrf.mxu0
  %v1088 = vadd.f32 %v838, %v1087
  %1089 = vmatmul.bf16.gmra.mxu0 %v798
  %v1090 = vpop.f32.mrf.mxu0
  %v1091 = vadd.f32 %v838, %v1090
  %v1092 = vpop.f32.mrf.mxu0
  %v1093 = vadd.f32 %v838, %v1092
  %1094 = vmatmul.bf16.gmra.mxu0 %v800
  %v1095 = vpop.f32.mrf.mxu0
  %v1096 = vadd.f32 %v838, %v1095
  %v1097 = vpop.f32.mrf.mxu0
  %v1098 = vadd.f32 %v838, %v1097
  %1099 = vmatmul.bf16.gmra.mxu0 %v802
  %v1100 = vpop.f32.mrf.mxu0
  %v1101 = vadd.f32 %v838, %v1100
  %v1102 = vpop.f32.mrf.mxu0
  %v1103 = vadd.f32 %v838, %v1102
  %1104 = vdwg.mxu0
  %1105 = vmatpush.bf16.msra.mxu0 %v919
  %1106 = vmatpush.bf16.msra.mxu0 %v918
  %1107 = vmatpush.bf16.msra.mxu0 %v917
  %1108 = vmatpush.bf16.msra.mxu0 %v916
  %1109 = vmatpush.bf16.msra.mxu0 %v915
  %1110 = vmatpush.bf16.msra.mxu0 %v914
  %1111 = vmatpush.bf16.msra.mxu0 %v913
  %1112 = vmatpush.bf16.msra.mxu0 %v912
  %1113 = vmatmul.bf16.gmra.mxu0 %v741
  %v1114 = vpop.f32.mrf.mxu0
  %v1115 = vadd.f32 %v946, %v1114
  %v1116 = vpop.f32.mrf.mxu0
  %v1117 = vadd.f32 %v948, %v1116
  %1118 = vmatmul.bf16.gmra.mxu0 %v743
  %v1119 = vpop.f32.mrf.mxu0
  %v1120 = vadd.f32 %v951, %v1119
  %v1121 = vpop.f32.mrf.mxu0
  %v1122 = vadd.f32 %v953, %v1121
  %1123 = vmatmul.bf16.gmra.mxu0 %v745
  %v1124 = vpop.f32.mrf.mxu0
  %v1125 = vadd.f32 %v956, %v1124
  %v1126 = vpop.f32.mrf.mxu0
  %v1127 = vadd.f32 %v958, %v1126
  %1128 = vmatmul.bf16.gmra.mxu0 %v747
  %v1129 = vpop.f32.mrf.mxu0
  %v1130 = vadd.f32 %v961, %v1129
  %v1131 = vpop.f32.mrf.mxu0
  %v1132 = vadd.f32 %v963, %v1131
  %1133 = vmatmul.bf16.gmra.mxu0 %v749
  %v1134 = vpop.f32.mrf.mxu0
  %v1135 = vadd.f32 %v966, %v1134
  %v1136 = vpop.f32.mrf.mxu0
  %v1137 = vadd.f32 %v968, %v1136
  %1138 = vmatmul.bf16.gmra.mxu0 %v751
  %v1139 = vpop.f32.mrf.mxu0
  %v1140 = vadd.f32 %v971, %v1139
  %v1141 = vpop.f32.mrf.mxu0
  %v1142 = vadd.f32 %v973, %v1141
  %1143 = vmatmul.bf16.gmra.mxu0 %v753
  %v1144 = vpop.f32.mrf.mxu0
  %v1145 = vadd.f32 %v976, %v1144
  %v1146 = vpop.f32.mrf.mxu0
  %v1147 = vadd.f32 %v978, %v1146
  %1148 = vmatmul.bf16.gmra.mxu0 %v755
  %v1149 = vpop.f32.mrf.mxu0
  %v1150 = vadd.f32 %v981, %v1149
  %v1151 = vpop.f32.mrf.mxu0
  %v1152 = vadd.f32 %v983, %v1151
  %1153 = vmatmul.bf16.gmra.mxu0 %v757
  %v1154 = vpop.f32.mrf.mxu0
  %v1155 = vadd.f32 %v986, %v1154
  %v1156 = vpop.f32.mrf.mxu0
  %v1157 = vadd.f32 %v988, %v1156
  %1158 = vmatmul.bf16.gmra.mxu0 %v759
  %v1159 = vpop.f32.mrf.mxu0
  %v1160 = vadd.f32 %v991, %v1159
  %v1161 = vpop.f32.mrf.mxu0
  %v1162 = vadd.f32 %v993, %v1161
  %1163 = vmatmul.bf16.gmra.mxu0 %v761
  %v1164 = vpop.f32.mrf.mxu0
  %v1165 = vadd.f32 %v996, %v1164
  %v1166 = vpop.f32.mrf.mxu0
  %v1167 = vadd.f32 %v998, %v1166
  %1168 = vmatmul.bf16.gmra.mxu0 %v763
  %v1169 = vpop.f32.mrf.mxu0
  %v1170 = vadd.f32 %v1001, %v1169
  %v1171 = vpop.f32.mrf.mxu0
  %v1172 = vadd.f32 %v1003, %v1171
  %1173 = vmatmul.bf16.gmra.mxu0 %v765
  %v1174 = vpop.f32.mrf.mxu0
  %v1175 = vadd.f32 %v1006, %v1174
  %v1176 = vpop.f32.mrf.mxu0
  %v1177 = vadd.f32 %v1008, %v1176
  %1178 = vmatmul.bf16.gmra.mxu0 %v767
  %v1179 = vpop.f32.mrf.mxu0
  %v1180 = vadd.f32 %v1011, %v1179
  %v1181 = vpop.f32.mrf.mxu0
  %v1182 = vadd.f32 %v1013, %v1181
  %1183 = vmatmul.bf16.gmra.mxu0 %v769
  %v1184 = vpop.f32.mrf.mxu0
  %v1185 = vadd.f32 %v1016, %v1184
  %v1186 = vpop.f32.mrf.mxu0
  %v1187 = vadd.f32 %v1018, %v1186
  %1188 = vmatmul.bf16.gmra.mxu0 %v771
  %v1189 = vpop.f32.mrf.mxu0
  %v1190 = vadd.f32 %v1021, %v1189
  %v1191 = vpop.f32.mrf.mxu0
  %v1192 = vadd.f32 %v1023, %v1191
  %1193 = vmatmul.bf16.gmra.mxu0 %v773
  %v1194 = vpop.f32.mrf.mxu0
  %v1195 = vadd.f32 %v1026, %v1194
  %v1196 = vpop.f32.mrf.mxu0
  %v1197 = vadd.f32 %v1028, %v1196
  %1198 = vmatmul.bf16.gmra.mxu0 %v775
  %v1199 = vpop.f32.mrf.mxu0
  %v1200 = vadd.f32 %v1031, %v1199
  %v1201 = vpop.f32.mrf.mxu0
  %v1202 = vadd.f32 %v1033, %v1201
  %1203 = vmatmul.bf16.gmra.mxu0 %v777
  %v1204 = vpop.f32.mrf.mxu0
  %v1205 = vadd.f32 %v1036, %v1204
  %v1206 = vpop.f32.mrf.mxu0
  %v1207 = vadd.f32 %v1038, %v1206
  %1208 = vmatmul.bf16.gmra.mxu0 %v779
  %v1209 = vpop.f32.mrf.mxu0
  %v1210 = vadd.f32 %v1041, %v1209
  %v1211 = vpop.f32.mrf.mxu0
  %v1212 = vadd.f32 %v1043, %v1211
  %1213 = vmatmul.bf16.gmra.mxu0 %v781
  %v1214 = vpop.f32.mrf.mxu0
  %v1215 = vadd.f32 %v1046, %v1214
  %v1216 = vpop.f32.mrf.mxu0
  %v1217 = vadd.f32 %v1048, %v1216
  %1218 = vmatmul.bf16.gmra.mxu0 %v783
  %v1219 = vpop.f32.mrf.mxu0
  %v1220 = vadd.f32 %v1051, %v1219
  %v1221 = vpop.f32.mrf.mxu0
  %v1222 = vadd.f32 %v1053, %v1221
  %1223 = vmatmul.bf16.gmra.mxu0 %v785
  %v1224 = vpop.f32.mrf.mxu0
  %v1225 = vadd.f32 %v1056, %v1224
  %v1226 = vpop.f32.mrf.mxu0
  %v1227 = vadd.f32 %v1058, %v1226
  %1228 = vmatmul.bf16.gmra.mxu0 %v787
  %v1229 = vpop.f32.mrf.mxu0
  %v1230 = vadd.f32 %v1061, %v1229
  %v1231 = vpop.f32.mrf.mxu0
  %v1232 = vadd.f32 %v1063, %v1231
  %1233 = vmatmul.bf16.gmra.mxu0 %v789
  %v1234 = vpop.f32.mrf.mxu0
  %v1235 = vadd.f32 %v1066, %v1234
  %v1236 = vpop.f32.mrf.mxu0
  %v1237 = vadd.f32 %v1068, %v1236
  %1238 = vmatmul.bf16.gmra.mxu0 %v791
  %v1239 = vpop.f32.mrf.mxu0
  %v1240 = vadd.f32 %v1071, %v1239
  %v1241 = vpop.f32.mrf.mxu0
  %v1242 = vadd.f32 %v1073, %v1241
  %1243 = vmatmul.bf16.gmra.mxu0 %v793
  %v1244 = vpop.f32.mrf.mxu0
  %v1245 = vadd.f32 %v1076, %v1244
  %v1246 = vpop.f32.mrf.mxu0
  %v1247 = vadd.f32 %v1078, %v1246
  %1248 = vmatmul.bf16.gmra.mxu0 %v795
  %v1249 = vpop.f32.mrf.mxu0
  %v1250 = vadd.f32 %v1081, %v1249
  %v1251 = vpop.f32.mrf.mxu0
  %v1252 = vadd.f32 %v1083, %v1251
  %1253 = vmatmul.bf16.gmra.mxu0 %v797
  %v1254 = vpop.f32.mrf.mxu0
  %v1255 = vadd.f32 %v1086, %v1254
  %v1256 = vpop.f32.mrf.mxu0
  %v1257 = vadd.f32 %v1088, %v1256
  %1258 = vmatmul.bf16.gmra.mxu0 %v799
  %v1259 = vpop.f32.mrf.mxu0
  %v1260 = vadd.f32 %v1091, %v1259
  %v1261 = vpop.f32.mrf.mxu0
  %v1262 = vadd.f32 %v1093, %v1261
  %1263 = vmatmul.bf16.gmra.mxu0 %v801
  %v1264 = vpop.f32.mrf.mxu0
  %v1265 = vadd.f32 %v1096, %v1264
  %v1266 = vpop.f32.mrf.mxu0
  %v1267 = vadd.f32 %v1098, %v1266
  %1268 = vmatmul.bf16.gmra.mxu0 %v803
  %v1269 = vpop.f32.mrf.mxu0
  %v1270 = vadd.f32 %v1101, %v1269
  %v1271 = vpop.f32.mrf.mxu0
  %v1272 = vadd.f32 %v1103, %v1271
  %1273 = vdwg.mxu0
  %v1274 = vmax.f32 %v1115, 0.0
  %v1275 = vmax.f32 %v1117, 0.0
  %v1276 = vmax.f32 %v1120, 0.0
  %v1277 = vmax.f32 %v1122, 0.0
  %v1278 = vmax.f32 %v1125, 0.0
  %v1279 = vmax.f32 %v1127, 0.0
  %v1280 = vmax.f32 %v1130, 0.0
  %v1281 = vmax.f32 %v1132, 0.0
  %v1282 = vmax.f32 %v1135, 0.0
  %v1283 = vmax.f32 %v1137, 0.0
  %v1284 = vmax.f32 %v1140, 0.0
  %v1285 = vmax.f32 %v1142, 0.0
  %v1286 = vmax.f32 %v1145, 0.0
  %v1287 = vmax.f32 %v1147, 0.0
  %v1288 = vmax.f32 %v1150, 0.0
  %v1289 = vmax.f32 %v1152, 0.0
  %v1290 = vmax.f32 %v1155, 0.0
  %v1291 = vmax.f32 %v1157, 0.0
  %v1292 = vmax.f32 %v1160, 0.0
  %v1293 = vmax.f32 %v1162, 0.0
  %v1294 = vmax.f32 %v1165, 0.0
  %v1295 = vmax.f32 %v1167, 0.0
  %v1296 = vmax.f32 %v1170, 0.0
  %v1297 = vmax.f32 %v1172, 0.0
  %v1298 = vmax.f32 %v1175, 0.0
  %v1299 = vmax.f32 %v1177, 0.0
  %v1300 = vmax.f32 %v1180, 0.0
  %v1301 = vmax.f32 %v1182, 0.0
  %v1302 = vmax.f32 %v1185, 0.0
  %v1303 = vmax.f32 %v1187, 0.0
  %v1304 = vmax.f32 %v1190, 0.0
  %v1305 = vmax.f32 %v1192, 0.0
  %v1306 = vmax.f32 %v1195, 0.0
  %v1307 = vmax.f32 %v1197, 0.0
  %v1308 = vmax.f32 %v1200, 0.0
  %v1309 = vmax.f32 %v1202, 0.0
  %v1310 = vmax.f32 %v1205, 0.0
  %v1311 = vmax.f32 %v1207, 0.0
  %v1312 = vmax.f32 %v1210, 0.0
  %v1313 = vmax.f32 %v1212, 0.0
  %v1314 = vmax.f32 %v1215, 0.0
  %v1315 = vmax.f32 %v1217, 0.0
  %v1316 = vmax.f32 %v1220, 0.0
  %v1317 = vmax.f32 %v1222, 0.0
  %v1318 = vmax.f32 %v1225, 0.0
  %v1319 = vmax.f32 %v1227, 0.0
  %v1320 = vmax.f32 %v1230, 0.0
  %v1321 = vmax.f32 %v1232, 0.0
  %v1322 = vmax.f32 %v1235, 0.0
  %v1323 = vmax.f32 %v1237, 0.0
  %v1324 = vmax.f32 %v1240, 0.0
  %v1325 = vmax.f32 %v1242, 0.0
  %v1326 = vmax.f32 %v1245, 0.0
  %v1327 = vmax.f32 %v1247, 0.0
  %v1328 = vmax.f32 %v1250, 0.0
  %v1329 = vmax.f32 %v1252, 0.0
  %v1330 = vmax.f32 %v1255, 0.0
  %v1331 = vmax.f32 %v1257, 0.0
  %v1332 = vmax.f32 %v1260, 0.0
  %v1333 = vmax.f32 %v1262, 0.0
  %v1334 = vmax.f32 %v1265, 0.0
  %v1335 = vmax.f32 %v1267, 0.0
  %v1336 = vmax.f32 %v1270, 0.0
  %v1337 = vmax.f32 %v1272, 0.0
  %v1338 = vpack.c.bf16 %v1275, %v1274
  %v1339 = vpack.c.bf16 %v1277, %v1276
  %v1340 = vpack.c.bf16 %v1279, %v1278
  %v1341 = vpack.c.bf16 %v1281, %v1280
  %v1342 = vpack.c.bf16 %v1283, %v1282
  %v1343 = vpack.c.bf16 %v1285, %v1284
  %v1344 = vpack.c.bf16 %v1287, %v1286
  %v1345 = vpack.c.bf16 %v1289, %v1288
  %v1346 = vpack.c.bf16 %v1291, %v1290
  %v1347 = vpack.c.bf16 %v1293, %v1292
  %v1348 = vpack.c.bf16 %v1295, %v1294
  %v1349 = vpack.c.bf16 %v1297, %v1296
  %v1350 = vpack.c.bf16 %v1299, %v1298
  %v1351 = vpack.c.bf16 %v1301, %v1300
  %v1352 = vpack.c.bf16 %v1303, %v1302
  %v1353 = vpack.c.bf16 %v1305, %v1304
  %v1354 = vpack.c.bf16 %v1307, %v1306
  %v1355 = vpack.c.bf16 %v1309, %v1308
  %v1356 = vpack.c.bf16 %v1311, %v1310
  %v1357 = vpack.c.bf16 %v1313, %v1312
  %v1358 = vpack.c.bf16 %v1315, %v1314
  %v1359 = vpack.c.bf16 %v1317, %v1316
  %v1360 = vpack.c.bf16 %v1319, %v1318
  %v1361 = vpack.c.bf16 %v1321, %v1320
  %v1362 = vpack.c.bf16 %v1323, %v1322
  %v1363 = vpack.c.bf16 %v1325, %v1324
  %v1364 = vpack.c.bf16 %v1327, %v1326
  %v1365 = vpack.c.bf16 %v1329, %v1328
  %v1366 = vpack.c.bf16 %v1331, %v1330
  %v1367 = vpack.c.bf16 %v1333, %v1332
  %v1368 = vpack.c.bf16 %v1335, %v1334
  %v1369 = vpack.c.bf16 %v1337, %v1336
  %v1370 = vld [vmem:[%s5] sm:$0xf]
  %v1371 = vld [vmem:[%s5 + $0x4] sm:$0xf]
  %v1372 = vld [vmem:[%s5 + $0x8] sm:$0xf]
  %v1373 = vld [vmem:[%s5 + $0xc] sm:$0xf]
  %v1374 = vld [vmem:[%s5 + $0x10] sm:$0xf]
  %v1375 = vld [vmem:[%s5 + $0x14] sm:$0xf]
  %v1376 = vld [vmem:[%s5 + $0x18] sm:$0xf]
  %v1377 = vld [vmem:[%s5 + $0x1c] sm:$0xf]
  %v1378 = vld [vmem:[%s5 + $0x20] sm:$0xf]
  %v1379 = vld [vmem:[%s5 + $0x24] sm:$0xf]
  %v1380 = vld [vmem:[%s5 + $0x28] sm:$0xf]
  %v1381 = vld [vmem:[%s5 + $0x2c] sm:$0xf]
  %v1382 = vld [vmem:[%s5 + $0x30] sm:$0xf]
  %v1383 = vld [vmem:[%s5 + $0x34] sm:$0xf]
  %v1384 = vld [vmem:[%s5 + $0x38] sm:$0xf]
  %v1385 = vld [vmem:[%s5 + $0x3c] sm:$0xf]
  %v1386 = vld [vmem:[%s6] sm:$0x1]
  %v1388 = vperm.slane %v1386, 0
  %v1406 = vunpack.c.l.b16 %v1370
  %v1407 = vunpack.c.l.b16 %v1371
  %v1408 = vunpack.c.l.b16 %v1372
  %v1409 = vunpack.c.l.b16 %v1373
  %v1410 = vunpack.c.l.b16 %v1374
  %v1411 = vunpack.c.l.b16 %v1375
  %v1412 = vunpack.c.l.b16 %v1376
  %v1413 = vunpack.c.l.b16 %v1377
  %v1414 = vunpack.c.l.b16 %v1378
  %v1415 = vunpack.c.l.b16 %v1379
  %v1416 = vunpack.c.l.b16 %v1380
  %v1417 = vunpack.c.l.b16 %v1381
  %v1418 = vunpack.c.l.b16 %v1382
  %v1419 = vunpack.c.l.b16 %v1383
  %v1420 = vunpack.c.l.b16 %v1384
  %v1421 = vunpack.c.l.b16 %v1385
  %v1422 = vpack.c.b16 %v1407, %v1406
  %v1423 = vpack.c.b16 %v1409, %v1408
  %v1424 = vpack.c.b16 %v1411, %v1410
  %v1425 = vpack.c.b16 %v1413, %v1412
  %v1426 = vpack.c.b16 %v1415, %v1414
  %v1427 = vpack.c.b16 %v1417, %v1416
  %v1428 = vpack.c.b16 %v1419, %v1418
  %v1429 = vpack.c.b16 %v1421, %v1420
  %1438 = vmatpush.bf16.msra.mxu0 %v1429
  %1439 = vmatpush.bf16.msra.mxu0 %v1428
  %1440 = vmatpush.bf16.msra.mxu0 %v1427
  %1441 = vmatpush.bf16.msra.mxu0 %v1426
  %1442 = vmatpush.bf16.msra.mxu0 %v1425
  %1443 = vmatpush.bf16.msra.mxu0 %v1424
  %1444 = vmatpush.bf16.msra.mxu0 %v1423
  %1445 = vmatpush.bf16.msra.mxu0 %v1422
  %1446 = vmatmul.bf16.gmra.mxu0 %v1338
  %v1447 = vpop.f32.mrf.mxu0
  %v1448 = vadd.f32 %v1388, %v1447
  %v1449 = vpop.f32.mrf.mxu0
  %v1450 = vadd.f32 %v1388, %v1449
  %1451 = vmatmul.bf16.gmra.mxu0 %v1339
  %v1452 = vpop.f32.mrf.mxu0
  %v1453 = vadd.f32 %v1388, %v1452
  %v1454 = vpop.f32.mrf.mxu0
  %v1455 = vadd.f32 %v1388, %v1454
  %1456 = vmatmul.bf16.gmra.mxu0 %v1340
  %v1457 = vpop.f32.mrf.mxu0
  %v1458 = vadd.f32 %v1388, %v1457
  %v1459 = vpop.f32.mrf.mxu0
  %v1460 = vadd.f32 %v1388, %v1459
  %1461 = vmatmul.bf16.gmra.mxu0 %v1341
  %v1462 = vpop.f32.mrf.mxu0
  %v1463 = vadd.f32 %v1388, %v1462
  %v1464 = vpop.f32.mrf.mxu0
  %v1465 = vadd.f32 %v1388, %v1464
  %1466 = vmatmul.bf16.gmra.mxu0 %v1342
  %v1467 = vpop.f32.mrf.mxu0
  %v1468 = vadd.f32 %v1388, %v1467
  %v1469 = vpop.f32.mrf.mxu0
  %v1470 = vadd.f32 %v1388, %v1469
  %1471 = vmatmul.bf16.gmra.mxu0 %v1343
  %v1472 = vpop.f32.mrf.mxu0
  %v1473 = vadd.f32 %v1388, %v1472
  %v1474 = vpop.f32.mrf.mxu0
  %v1475 = vadd.f32 %v1388, %v1474
  %1476 = vmatmul.bf16.gmra.mxu0 %v1344
  %v1477 = vpop.f32.mrf.mxu0
  %v1478 = vadd.f32 %v1388, %v1477
  %v1479 = vpop.f32.mrf.mxu0
  %v1480 = vadd.f32 %v1388, %v1479
  %1481 = vmatmul.bf16.gmra.mxu0 %v1345
  %v1482 = vpop.f32.mrf.mxu0
  %v1483 = vadd.f32 %v1388, %v1482
  %v1484 = vpop.f32.mrf.mxu0
  %v1485 = vadd.f32 %v1388, %v1484
  %1486 = vmatmul.bf16.gmra.mxu0 %v1346
  %v1487 = vpop.f32.mrf.mxu0
  %v1488 = vadd.f32 %v1388, %v1487
  %v1489 = vpop.f32.mrf.mxu0
  %v1490 = vadd.f32 %v1388, %v1489
  %1491 = vmatmul.bf16.gmra.mxu0 %v1347
  %v1492 = vpop.f32.mrf.mxu0
  %v1493 = vadd.f32 %v1388, %v1492
  %v1494 = vpop.f32.mrf.mxu0
  %v1495 = vadd.f32 %v1388, %v1494
  %1496 = vmatmul.bf16.gmra.mxu0 %v1348
  %v1497 = vpop.f32.mrf.mxu0
  %v1498 = vadd.f32 %v1388, %v1497
  %v1499 = vpop.f32.mrf.mxu0
  %v1500 = vadd.f32 %v1388, %v1499
  %1501 = vmatmul.bf16.gmra.mxu0 %v1349
  %v1502 = vpop.f32.mrf.mxu0
  %v1503 = vadd.f32 %v1388, %v1502
  %v1504 = vpop.f32.mrf.mxu0
  %v1505 = vadd.f32 %v1388, %v1504
  %1506 = vmatmul.bf16.gmra.mxu0 %v1350
  %v1507 = vpop.f32.mrf.mxu0
  %v1508 = vadd.f32 %v1388, %v1507
  %v1509 = vpop.f32.mrf.mxu0
  %v1510 = vadd.f32 %v1388, %v1509
  %1511 = vmatmul.bf16.gmra.mxu0 %v1351
  %v1512 = vpop.f32.mrf.mxu0
  %v1513 = vadd.f32 %v1388, %v1512
  %v1514 = vpop.f32.mrf.mxu0
  %v1515 = vadd.f32 %v1388, %v1514
  %1516 = vmatmul.bf16.gmra.mxu0 %v1352
  %v1517 = vpop.f32.mrf.mxu0
  %v1518 = vadd.f32 %v1388, %v1517
  %v1519 = vpop.f32.mrf.mxu0
  %v1520 = vadd.f32 %v1388, %v1519
  %1521 = vmatmul.bf16.gmra.mxu0 %v1353
  %v1522 = vpop.f32.mrf.mxu0
  %v1523 = vadd.f32 %v1388, %v1522
  %v1524 = vpop.f32.mrf.mxu0
  %v1525 = vadd.f32 %v1388, %v1524
  %1526 = vmatmul.bf16.gmra.mxu0 %v1354
  %v1527 = vpop.f32.mrf.mxu0
  %v1528 = vadd.f32 %v1388, %v1527
  %v1529 = vpop.f32.mrf.mxu0
  %v1530 = vadd.f32 %v1388, %v1529
  %1531 = vmatmul.bf16.gmra.mxu0 %v1355
  %v1532 = vpop.f32.mrf.mxu0
  %v1533 = vadd.f32 %v1388, %v1532
  %v1534 = vpop.f32.mrf.mxu0
  %v1535 = vadd.f32 %v1388, %v1534
  %1536 = vmatmul.bf16.gmra.mxu0 %v1356
  %v1537 = vpop.f32.mrf.mxu0
  %v1538 = vadd.f32 %v1388, %v1537
  %v1539 = vpop.f32.mrf.mxu0
  %v1540 = vadd.f32 %v1388, %v1539
  %1541 = vmatmul.bf16.gmra.mxu0 %v1357
  %v1542 = vpop.f32.mrf.mxu0
  %v1543 = vadd.f32 %v1388, %v1542
  %v1544 = vpop.f32.mrf.mxu0
  %v1545 = vadd.f32 %v1388, %v1544
  %1546 = vmatmul.bf16.gmra.mxu0 %v1358
  %v1547 = vpop.f32.mrf.mxu0
  %v1548 = vadd.f32 %v1388, %v1547
  %v1549 = vpop.f32.mrf.mxu0
  %v1550 = vadd.f32 %v1388, %v1549
  %1551 = vmatmul.bf16.gmra.mxu0 %v1359
  %v1552 = vpop.f32.mrf.mxu0
  %v1553 = vadd.f32 %v1388, %v1552
  %v1554 = vpop.f32.mrf.mxu0
  %v1555 = vadd.f32 %v1388, %v1554
  %1556 = vmatmul.bf16.gmra.mxu0 %v1360
  %v1557 = vpop.f32.mrf.mxu0
  %v1558 = vadd.f32 %v1388, %v1557
  %v1559 = vpop.f32.mrf.mxu0
  %v1560 = vadd.f32 %v1388, %v1559
  %1561 = vmatmul.bf16.gmra.mxu0 %v1361
  %v1562 = vpop.f32.mrf.mxu0
  %v1563 = vadd.f32 %v1388, %v1562
  %v1564 = vpop.f32.mrf.mxu0
  %v1565 = vadd.f32 %v1388, %v1564
  %1566 = vmatmul.bf16.gmra.mxu0 %v1362
  %v1567 = vpop.f32.mrf.mxu0
  %v1568 = vadd.f32 %v1388, %v1567
  %v1569 = vpop.f32.mrf.mxu0
  %v1570 = vadd.f32 %v1388, %v1569
  %1571 = vmatmul.bf16.gmra.mxu0 %v1363
  %v1572 = vpop.f32.mrf.mxu0
  %v1573 = vadd.f32 %v1388, %v1572
  %v1574 = vpop.f32.mrf.mxu0
  %v1575 = vadd.f32 %v1388, %v1574
  %1576 = vmatmul.bf16.gmra.mxu0 %v1364
  %v1577 = vpop.f32.mrf.mxu0
  %v1578 = vadd.f32 %v1388, %v1577
  %v1579 = vpop.f32.mrf.mxu0
  %v1580 = vadd.f32 %v1388, %v1579
  %1581 = vmatmul.bf16.gmra.mxu0 %v1365
  %v1582 = vpop.f32.mrf.mxu0
  %v1583 = vadd.f32 %v1388, %v1582
  %v1584 = vpop.f32.mrf.mxu0
  %v1585 = vadd.f32 %v1388, %v1584
  %1586 = vmatmul.bf16.gmra.mxu0 %v1366
  %v1587 = vpop.f32.mrf.mxu0
  %v1588 = vadd.f32 %v1388, %v1587
  %v1589 = vpop.f32.mrf.mxu0
  %v1590 = vadd.f32 %v1388, %v1589
  %1591 = vmatmul.bf16.gmra.mxu0 %v1367
  %v1592 = vpop.f32.mrf.mxu0
  %v1593 = vadd.f32 %v1388, %v1592
  %v1594 = vpop.f32.mrf.mxu0
  %v1595 = vadd.f32 %v1388, %v1594
  %1596 = vmatmul.bf16.gmra.mxu0 %v1368
  %v1597 = vpop.f32.mrf.mxu0
  %v1598 = vadd.f32 %v1388, %v1597
  %v1599 = vpop.f32.mrf.mxu0
  %v1600 = vadd.f32 %v1388, %v1599
  %1601 = vmatmul.bf16.gmra.mxu0 %v1369
  %v1602 = vpop.f32.mrf.mxu0
  %v1603 = vadd.f32 %v1388, %v1602
  %v1604 = vpop.f32.mrf.mxu0
  %v1605 = vadd.f32 %v1388, %v1604
  %1606 = vdwg.mxu0
  %v1607 = vpack.c.bf16 %v1448, %v1448
  %v1608 = vpack.c.bf16 %v1450, %v1450
  %v1609 = vpack.c.bf16 %v1453, %v1453
  %v1610 = vpack.c.bf16 %v1455, %v1455
  %v1611 = vpack.c.bf16 %v1458, %v1458
  %v1612 = vpack.c.bf16 %v1460, %v1460
  %v1613 = vpack.c.bf16 %v1463, %v1463
  %v1614 = vpack.c.bf16 %v1465, %v1465
  %v1615 = vpack.c.bf16 %v1468, %v1468
  %v1616 = vpack.c.bf16 %v1470, %v1470
  %v1617 = vpack.c.bf16 %v1473, %v1473
  %v1618 = vpack.c.bf16 %v1475, %v1475
  %v1619 = vpack.c.bf16 %v1478, %v1478
  %v1620 = vpack.c.bf16 %v1480, %v1480
  %v1621 = vpack.c.bf16 %v1483, %v1483
  %v1622 = vpack.c.bf16 %v1485, %v1485
  %v1623 = vpack.c.bf16 %v1488, %v1488
  %v1624 = vpack.c.bf16 %v1490, %v1490
  %v1625 = vpack.c.bf16 %v1493, %v1493
  %v1626 = vpack.c.bf16 %v1495, %v1495
  %v1627 = vpack.c.bf16 %v1498, %v1498
  %v1628 = vpack.c.bf16 %v1500, %v1500
  %v1629 = vpack.c.bf16 %v1503, %v1503
  %v1630 = vpack.c.bf16 %v1505, %v1505
  %v1631 = vpack.c.bf16 %v1508, %v1508
  %v1632 = vpack.c.bf16 %v1510, %v1510
  %v1633 = vpack.c.bf16 %v1513, %v1513
  %v1634 = vpack.c.bf16 %v1515, %v1515
  %v1635 = vpack.c.bf16 %v1518, %v1518
  %v1636 = vpack.c.bf16 %v1520, %v1520
  %v1637 = vpack.c.bf16 %v1523, %v1523
  %v1638 = vpack.c.bf16 %v1525, %v1525
  %v1639 = vpack.c.bf16 %v1528, %v1528
  %v1640 = vpack.c.bf16 %v1530, %v1530
  %v1641 = vpack.c.bf16 %v1533, %v1533
  %v1642 = vpack.c.bf16 %v1535, %v1535
  %v1643 = vpack.c.bf16 %v1538, %v1538
  %v1644 = vpack.c.bf16 %v1540, %v1540
  %v1645 = vpack.c.bf16 %v1543, %v1543
  %v1646 = vpack.c.bf16 %v1545, %v1545
  %v1647 = vpack.c.bf16 %v1548, %v1548
  %v1648 = vpack.c.bf16 %v1550, %v1550
  %v1649 = vpack.c.bf16 %v1553, %v1553
  %v1650 = vpack.c.bf16 %v1555, %v1555
  %v1651 = vpack.c.bf16 %v1558, %v1558
  %v1652 = vpack.c.bf16 %v1560, %v1560
  %v1653 = vpack.c.bf16 %v1563, %v1563
  %v1654 = vpack.c.bf16 %v1565, %v1565
  %v1655 = vpack.c.bf16 %v1568, %v1568
  %v1656 = vpack.c.bf16 %v1570, %v1570
  %v1657 = vpack.c.bf16 %v1573, %v1573
  %v1658 = vpack.c.bf16 %v1575, %v1575
  %v1659 = vpack.c.bf16 %v1578, %v1578
  %v1660 = vpack.c.bf16 %v1580, %v1580
  %v1661 = vpack.c.bf16 %v1583, %v1583
  %v1662 = vpack.c.bf16 %v1585, %v1585
  %v1663 = vpack.c.bf16 %v1588, %v1588
  %v1664 = vpack.c.bf16 %v1590, %v1590
  %v1665 = vpack.c.bf16 %v1593, %v1593
  %v1666 = vpack.c.bf16 %v1595, %v1595
  %v1667 = vpack.c.bf16 %v1598, %v1598
  %v1668 = vpack.c.bf16 %v1600, %v1600
  %v1669 = vpack.c.bf16 %v1603, %v1603
  %v1670 = vpack.c.bf16 %v1605, %v1605
  %1671 = vst [vmem:[%s7] sm:$0xf] %v1607
  %1672 = vst [vmem:[%s7 + $0x4] sm:$0xf] %v1608
  %1673 = vst [vmem:[%s7 + $0x8] sm:$0xf] %v1609
  %1674 = vst [vmem:[%s7 + $0xc] sm:$0xf] %v1610
  %1675 = vst [vmem:[%s7 + $0x10] sm:$0xf] %v1611
  %1676 = vst [vmem:[%s7 + $0x14] sm:$0xf] %v1612
  %1677 = vst [vmem:[%s7 + $0x18] sm:$0xf] %v1613
  %1678 = vst [vmem:[%s7 + $0x1c] sm:$0xf] %v1614
  %1679 = vst [vmem:[%s7 + $0x20] sm:$0xf] %v1615
  %1680 = vst [vmem:[%s7 + $0x24] sm:$0xf] %v1616
  %1681 = vst [vmem:[%s7 + $0x28] sm:$0xf] %v1617
  %1682 = vst [vmem:[%s7 + $0x2c] sm:$0xf] %v1618
  %1683 = vst [vmem:[%s7 + $0x30] sm:$0xf] %v1619
  %1684 = vst [vmem:[%s7 + $0x34] sm:$0xf] %v1620
  %1685 = vst [vmem:[%s7 + $0x38] sm:$0xf] %v1621
  %1686 = vst [vmem:[%s7 + $0x3c] sm:$0xf] %v1622
  %1687 = vst [vmem:[%s7 + $0x40] sm:$0xf] %v1623
  %1688 = vst [vmem:[%s7 + $0x44] sm:$0xf] %v1624
  %1689 = vst [vmem:[%s7 + $0x48] sm:$0xf] %v1625
  %1690 = vst [vmem:[%s7 + $0x4c] sm:$0xf] %v1626
  %1691 = vst [vmem:[%s7 + $0x50] sm:$0xf] %v1627
  %1692 = vst [vmem:[%s7 + $0x54] sm:$0xf] %v1628
  %1693 = vst [vmem:[%s7 + $0x58] sm:$0xf] %v1629
  %1694 = vst [vmem:[%s7 + $0x5c] sm:$0xf] %v1630
  %1695 = vst [vmem:[%s7 + $0x60] sm:$0xf] %v1631
  %1696 = vst [vmem:[%s7 + $0x64] sm:$0xf] %v1632
  %1697 = vst [vmem:[%s7 + $0x68] sm:$0xf] %v1633
  %1698 = vst [vmem:[%s7 + $0x6c] sm:$0xf] %v1634
  %1699 = vst [vmem:[%s7 + $0x70] sm:$0xf] %v1635
  %1700 = vst [vmem:[%s7 + $0x74] sm:$0xf] %v1636
  %1701 = vst [vmem:[%s7 + $0x78] sm:$0xf] %v1637
  %1702 = vst [vmem:[%s7 + $0x7c] sm:$0xf] %v1638
  %1703 = vst [vmem:[%s7 + $0x80] sm:$0xf] %v1639
  %1704 = vst [vmem:[%s7 + $0x84] sm:$0xf] %v1640
  %1705 = vst [vmem:[%s7 + $0x88] sm:$0xf] %v1641
  %1706 = vst [vmem:[%s7 + $0x8c] sm:$0xf] %v1642
  %1707 = vst [vmem:[%s7 + $0x90] sm:$0xf] %v1643
  %1708 = vst [vmem:[%s7 + $0x94] sm:$0xf] %v1644
  %1709 = vst [vmem:[%s7 + $0x98] sm:$0xf] %v1645
  %1710 = vst [vmem:[%s7 + $0x9c] sm:$0xf] %v1646
  %1711 = vst [vmem:[%s7 + $0xa0] sm:$0xf] %v1647
  %1712 = vst [vmem:[%s7 + $0xa4] sm:$0xf] %v1648
  %1713 = vst [vmem:[%s7 + $0xa8] sm:$0xf] %v1649
  %1714 = vst [vmem:[%s7 + $0xac] sm:$0xf] %v1650
  %1715 = vst [vmem:[%s7 + $0xb0] sm:$0xf] %v1651
  %1716 = vst [vmem:[%s7 + $0xb4] sm:$0xf] %v1652
  %1717 = vst [vmem:[%s7 + $0xb8] sm:$0xf] %v1653
  %1718 = vst [vmem:[%s7 + $0xbc] sm:$0xf] %v1654
  %1719 = vst [vmem:[%s7 + $0xc0] sm:$0xf] %v1655
  %1720 = vst [vmem:[%s7 + $0xc4] sm:$0xf] %v1656
  %1721 = vst [vmem:[%s7 + $0xc8] sm:$0xf] %v1657
  %1722 = vst [vmem:[%s7 + $0xcc] sm:$0xf] %v1658
  %1723 = vst [vmem:[%s7 + $0xd0] sm:$0xf] %v1659
  %1724 = vst [vmem:[%s7 + $0xd4] sm:$0xf] %v1660
  %1725 = vst [vmem:[%s7 + $0xd8] sm:$0xf] %v1661
  %1726 = vst [vmem:[%s7 + $0xdc] sm:$0xf] %v1662
  %1727 = vst [vmem:[%s7 + $0xe0] sm:$0xf] %v1663
  %1728 = vst [vmem:[%s7 + $0xe4] sm:$0xf] %v1664
  %1729 = vst [vmem:[%s7 + $0xe8] sm:$0xf] %v1665
  %1730 = vst [vmem:[%s7 + $0xec] sm:$0xf] %v1666
  %1731 = vst [vmem:[%s7 + $0xf0] sm:$0xf] %v1667
  %1732 = vst [vmem:[%s7 + $0xf4] sm:$0xf] %v1668
  %1733 = vst [vmem:[%s7 + $0xf8] sm:$0xf] %v1669
  %1734 = vst [vmem:[%s7 + $0xfc] sm:$0xf] %v1670
  // Predicated region
  $region30: #{simple_mlp_forward.1} parent=0 // pred_check
    _
  $region31: #{simple_mlp_forward.1} parent=0 // pred_check_branch
    %1736 = sbr.rel (0) target = $region33
  $region32: #{simple_mlp_forward.1} parent=0 // pred_region
    _
  $region33: #{simple_mlp_forward.1} parent=0 // pred_fallthru
    _
  // Predicated region
  $region34: #{simple_mlp_forward.1} parent=0 // pred_check
    _
  $region35: #{simple_mlp_forward.1} parent=0 // pred_check_branch
    %1738 = sbr.rel (0) target = $region37
  $region36: #{simple_mlp_forward.1} parent=0 // pred_region
    _
  $region37: #{simple_mlp_forward.1} parent=0 // pred_fallthru
    _

</llo_original>
